<compile_context>
chip_gen: v7x
topology: tpu7x:2x2x1
jax: 0.10.0
libtpu: 0.0.40
codegen_flags: <defaults>
</compile_context>

<pallas_src>
import math

import jax
import jax.numpy as jnp
from jax.experimental import pallas as pl
from jax.experimental.pallas import tpu as pltpu

# ---- small synthetic shapes consistent with the module ---------------------
B, N, C = 2, 8, 32           # batch, tokens (seq), channels
NUM_HEADS = 4
HEAD_DIM = C // NUM_HEADS
R = 2                        # MLP expansion ratio
HID = R * C
EPS = 1e-5                   # PyTorch nn.LayerNorm default

BN = B * N
SCALE = 1.0 / math.sqrt(HEAD_DIM)
SLAB_LANES = 128             # lane-padded width of both parameter slabs


def _layer_norm(x, w, b):
    mu = jnp.mean(x, axis=-1, keepdims=True)
    var = jnp.mean((x - mu) ** 2, axis=-1, keepdims=True)
    return (x - mu) * jax.lax.rsqrt(var + EPS) * w + b


def encoder_block_kernel(x_ref, w_ref, s_ref, o_ref):
    x = x_ref[...]                                   # (BN, C) float32

    # -- unpack parameter slabs (static sublane/lane slices, tiny) -----------
    ln1_w = s_ref[0:1, 0:C]
    ln1_b = s_ref[1:2, 0:C]
    ln2_w = s_ref[2:3, 0:C]
    ln2_b = s_ref[3:4, 0:C]
    b_qkv = s_ref[4:5, 0:3 * C]                      # (1, 3C), q part pre-scaled
    b_o = s_ref[5:6, 0:C]                            # (1, C)
    b_1 = s_ref[6:7, 0:HID]                          # (1, HID)
    b_2 = s_ref[7:8, 0:C]                            # (1, C)

    w_qkv = w_ref[0:C, 0:3 * C]                      # (C, 3C), q cols pre-scaled
    w_o = w_ref[C:2 * C, 0:C]                        # (C, C)
    w_1 = w_ref[2 * C:3 * C, 0:HID]                  # (C, HID)
    w_2 = w_ref[3 * C:3 * C + HID, 0:C]              # (HID, C)

    # ---------------- spatial mixing: MHSA(LN1(x)) + residual ----------------
    h = _layer_norm(x, ln1_w, ln1_b)                                   # (BN, C)
    qkv = jnp.dot(h, w_qkv,
                  preferred_element_type=jnp.float32) + b_qkv          # (BN, 3C)

    # Per-head lane slices of the fused qkv: no head-split transposes, no lane
    # concat.  concat_h(ctx_h) @ W_o == sum_h ctx_h @ W_o[h*D:(h+1)*D, :].
    attn_proj = jnp.zeros((BN, C), jnp.float32)
    for head in range(NUM_HEADS):
        lo = head * HEAD_DIM
        qh = qkv[:, lo:lo + HEAD_DIM].reshape(B, N, HEAD_DIM)          # scaled q
        kh = qkv[:, C + lo:C + lo + HEAD_DIM].reshape(B, N, HEAD_DIM)
        vh = qkv[:, 2 * C + lo:2 * C + lo + HEAD_DIM].reshape(B, N, HEAD_DIM)

        s = jnp.einsum("bqd,bkd->bqk", qh, kh,
                       preferred_element_type=jnp.float32)             # (B, N, N)
        m = jnp.max(s, axis=-1, keepdims=True)
        e = jnp.exp(s - m)
        p = e * pl.reciprocal(jnp.sum(e, axis=-1, keepdims=True), approx=True)
        ctx = jnp.einsum("bqk,bkd->bqd", p, vh,
                         preferred_element_type=jnp.float32)           # (B, N, D)
        attn_proj += jnp.dot(ctx.reshape(BN, HEAD_DIM),
                             w_o[lo:lo + HEAD_DIM, :],
                             preferred_element_type=jnp.float32)
    x = x + attn_proj + b_o

    # ---------------- channel mixing: MLP(LN2(x)) + residual -----------------
    h2 = _layer_norm(x, ln2_w, ln2_b)
    f1 = jnp.dot(h2, w_1, preferred_element_type=jnp.float32) + b_1
    # TODO(synk): PyTorch nn.GELU() default is exact erf GELU; tanh approximation
    # is used here (and in the reference below) for portable Mosaic lowering.
    f1 = jax.nn.gelu(f1, approximate=True)
    x = x + jnp.dot(f1, w_2, preferred_element_type=jnp.float32) + b_2

    o_ref[...] = x.astype(o_ref.dtype)


# ---------------------------------------------------------------------------
# Host-side parameter handling (ONE-TIME, model-load-time)
# ---------------------------------------------------------------------------
def make_params(key):
    ks = jax.random.split(key, 16)
    std = 0.02
    return {
        "ln1_w": 1.0 + std * jax.random.normal(ks[0], (1, C), jnp.float32),
        "ln1_b": std * jax.random.normal(ks[1], (1, C), jnp.float32),
        "wq": std * jax.random.normal(ks[2], (C, C), jnp.float32),
        "bq": std * jax.random.normal(ks[3], (1, C), jnp.float32),
        "wk": std * jax.random.normal(ks[4], (C, C), jnp.float32),
        "bk": std * jax.random.normal(ks[5], (1, C), jnp.float32),
        "wv": std * jax.random.normal(ks[6], (C, C), jnp.float32),
        "bv": std * jax.random.normal(ks[7], (1, C), jnp.float32),
        "wo": std * jax.random.normal(ks[8], (C, C), jnp.float32),
        "bo": std * jax.random.normal(ks[9], (1, C), jnp.float32),
        "ln2_w": 1.0 + std * jax.random.normal(ks[10], (1, C), jnp.float32),
        "ln2_b": std * jax.random.normal(ks[11], (1, C), jnp.float32),
        "w1": std * jax.random.normal(ks[12], (C, HID), jnp.float32),
        "b1": std * jax.random.normal(ks[13], (1, HID), jnp.float32),
        "w2": std * jax.random.normal(ks[14], (HID, C), jnp.float32),
        "b2": std * jax.random.normal(ks[15], (1, C), jnp.float32),
    }


def pack_params(p):
    """One-time packing of the 16 small parameters into 2 lane-padded slabs.

    Weight slab (3C+HID, 128): [w_qkv | w_o | w1 | w2] stacked along sublanes.
    Scalar slab (8, 128):      ln1_w/b, ln2_w/b, b_qkv, b_o, b1, b2.
    1/sqrt(HEAD_DIM) is folded into the q columns of w_qkv and b_qkv.
    """
    def pad_lanes(a):
        return jnp.pad(a, ((0, 0), (0, SLAB_LANES - a.shape[1])))

    w_qkv = jnp.concatenate([p["wq"] * SCALE, p["wk"], p["wv"]], axis=1)  # (C, 3C)
    w_slab = jnp.concatenate([
        pad_lanes(w_qkv),        # rows [0,   C)
        pad_lanes(p["wo"]),      # rows [C,  2C)
        pad_lanes(p["w1"]),      # rows [2C, 3C)
        pad_lanes(p["w2"]),      # rows [3C, 3C+HID)
    ], axis=0)                                                           # (160, 128)

    b_qkv = jnp.concatenate([p["bq"] * SCALE, p["bk"], p["bv"]], axis=1)  # (1, 3C)
    s_slab = jnp.concatenate([
        pad_lanes(p["ln1_w"]), pad_lanes(p["ln1_b"]),
        pad_lanes(p["ln2_w"]), pad_lanes(p["ln2_b"]),
        pad_lanes(b_qkv), pad_lanes(p["bo"]),
        pad_lanes(p["b1"]), pad_lanes(p["b2"]),
    ], axis=0)                                                           # (8, 128)
    return w_slab, s_slab


@jax.jit
def encoder_block(x, w_slab, s_slab):
    """Per-call path: free reshape + one grid-less pallas_call (3 input DMAs)."""
    x2 = x.reshape(BN, C)   # fold batch into tokens; layout-preserving, free
    out2 = pl.pallas_call(
        encoder_block_kernel,
        out_shape=jax.ShapeDtypeStruct((BN, C), x.dtype),
        in_specs=[pl.BlockSpec(memory_space=pltpu.MemorySpace.VMEM)
                  for _ in range(3)],
        out_specs=pl.BlockSpec(memory_space=pltpu.MemorySpace.VMEM),
    )(x2, w_slab, s_slab)
    return out2.reshape(B, N, C)


# ---------------------------------------------------------------------------
# Plain-JAX reference mirroring the PyTorch EncoderBlock forward
# ---------------------------------------------------------------------------
def reference(x, p):
    def ln(t, w, b):
        mu = jnp.mean(t, axis=-1, keepdims=True)
        var = jnp.mean((t - mu) ** 2, axis=-1, keepdims=True)
        return (t - mu) * jax.lax.rsqrt(var + EPS) * w + b

    h = ln(x, p["ln1_w"], p["ln1_b"])
    q = h @ p["wq"] + p["bq"]
    k = h @ p["wk"] + p["bk"]
    v = h @ p["wv"] + p["bv"]
    q = q.reshape(B, N, NUM_HEADS, HEAD_DIM).transpose(0, 2, 1, 3)
    k = k.reshape(B, N, NUM_HEADS, HEAD_DIM).transpose(0, 2, 1, 3)
    v = v.reshape(B, N, NUM_HEADS, HEAD_DIM).transpose(0, 2, 1, 3)
    s = jnp.einsum("bhqd,bhkd->bhqk", q, k) / math.sqrt(HEAD_DIM)
    a = jax.nn.softmax(s, axis=-1)
    o = jnp.einsum("bhqk,bhkd->bhqd", a, v).transpose(0, 2, 1, 3).reshape(B, N, C)
    x = x + (o @ p["wo"] + p["bo"])

    h2 = ln(x, p["ln2_w"], p["ln2_b"])
    f = jax.nn.gelu(h2 @ p["w1"] + p["b1"], approximate=True)
    x = x + (f @ p["w2"] + p["b2"])
    return x


if __name__ == "__main__":
    key = jax.random.PRNGKey(0)
    kx, kp = jax.random.split(key)
    x = jax.random.normal(kx, (B, N, C), jnp.float32)
    params = make_params(kp)

    # one-time packing at model-load time (hoisted out of the per-call path)
    w_slab, s_slab = jax.block_until_ready(pack_params(params))

    out = jax.block_until_ready(encoder_block(x, w_slab, s_slab))
    ref = reference(x, params)

    assert out.shape == (B, N, C)
    max_err = float(jnp.max(jnp.abs(out - ref)))
    assert jnp.allclose(out, ref, atol=1e-3, rtol=1e-3), (
        f"mismatch vs reference (max abs err {max_err})")
    print("KERNEL_OK")
</pallas_src>

<mosaic_0001>
module attributes {stable_mosaic.version = 11 : i64} {
  func.func @encoder_block_kernel(%arg0: memref<16x32xf32, #tpu.memory_space<vmem>>, %arg1: memref<160x128xf32, #tpu.memory_space<vmem>>, %arg2: memref<8x128xf32, #tpu.memory_space<vmem>>, %arg3: memref<16x32xf32, #tpu.memory_space<vmem>>) attributes {dimension_semantics = [], scalar_prefetch = 0 : i64, scratch_operands = 0 : i64, tpu.core_type = #tpu.core_type<tc>} {
    %c0 = arith.constant 0 : index
    %c0_0 = arith.constant 0 : index
    %0 = vector.load %arg0[%c0, %c0_0] : memref<16x32xf32, #tpu.memory_space<vmem>>, vector<16x32xf32>
    %c0_1 = arith.constant 0 : index
    %c0_2 = arith.constant 0 : index
    %1 = vector.load %arg2[%c0_1, %c0_2] : memref<8x128xf32, #tpu.memory_space<vmem>>, vector<1x32xf32>
    %c1 = arith.constant 1 : index
    %c0_3 = arith.constant 0 : index
    %2 = vector.load %arg2[%c1, %c0_3] : memref<8x128xf32, #tpu.memory_space<vmem>>, vector<1x32xf32>
    %c2 = arith.constant 2 : index
    %c0_4 = arith.constant 0 : index
    %3 = vector.load %arg2[%c2, %c0_4] : memref<8x128xf32, #tpu.memory_space<vmem>>, vector<1x32xf32>
    %c3 = arith.constant 3 : index
    %c0_5 = arith.constant 0 : index
    %4 = vector.load %arg2[%c3, %c0_5] : memref<8x128xf32, #tpu.memory_space<vmem>>, vector<1x32xf32>
    %c4 = arith.constant 4 : index
    %c0_6 = arith.constant 0 : index
    %5 = vector.load %arg2[%c4, %c0_6] : memref<8x128xf32, #tpu.memory_space<vmem>>, vector<1x96xf32>
    %c5 = arith.constant 5 : index
    %c0_7 = arith.constant 0 : index
    %6 = vector.load %arg2[%c5, %c0_7] : memref<8x128xf32, #tpu.memory_space<vmem>>, vector<1x32xf32>
    %c6 = arith.constant 6 : index
    %c0_8 = arith.constant 0 : index
    %7 = vector.load %arg2[%c6, %c0_8] : memref<8x128xf32, #tpu.memory_space<vmem>>, vector<1x64xf32>
    %c7 = arith.constant 7 : index
    %c0_9 = arith.constant 0 : index
    %8 = vector.load %arg2[%c7, %c0_9] : memref<8x128xf32, #tpu.memory_space<vmem>>, vector<1x32xf32>
    %c0_10 = arith.constant 0 : index
    %c0_11 = arith.constant 0 : index
    %9 = vector.load %arg1[%c0_10, %c0_11] : memref<160x128xf32, #tpu.memory_space<vmem>>, vector<32x96xf32>
    %c32 = arith.constant 32 : index
    %c0_12 = arith.constant 0 : index
    %10 = vector.load %arg1[%c32, %c0_12] : memref<160x128xf32, #tpu.memory_space<vmem>>, vector<32x32xf32>
    %c64 = arith.constant 64 : index
    %c0_13 = arith.constant 0 : index
    %11 = vector.load %arg1[%c64, %c0_13] : memref<160x128xf32, #tpu.memory_space<vmem>>, vector<32x64xf32>
    %c96 = arith.constant 96 : index
    %c0_14 = arith.constant 0 : index
    %12 = vector.load %arg1[%c96, %c0_14] : memref<160x128xf32, #tpu.memory_space<vmem>>, vector<64x32xf32>
    %cst = arith.constant dense<0.000000e+00> : vector<16xf32>
    %13 = vector.multi_reduction <add>, %0, %cst [1] : vector<16x32xf32> to vector<16xf32>
    %14 = vector.shape_cast %13 : vector<16xf32> to vector<16x1xf32>
    %cst_15 = arith.constant 3.200000e+01 : f32
    %15 = vector.broadcast %cst_15 : f32 to vector<16x1xf32>
    %16 = arith.divf %14, %15 : vector<16x1xf32>
    %17 = vector.broadcast %16 : vector<16x1xf32> to vector<16x32xf32>
    %18 = arith.subf %0, %17 : vector<16x32xf32>
    %19 = arith.mulf %18, %18 : vector<16x32xf32>
    %cst_16 = arith.constant dense<0.000000e+00> : vector<16xf32>
    %20 = vector.multi_reduction <add>, %19, %cst_16 [1] : vector<16x32xf32> to vector<16xf32>
    %21 = vector.shape_cast %20 : vector<16xf32> to vector<16x1xf32>
    %cst_17 = arith.constant 3.200000e+01 : f32
    %22 = vector.broadcast %cst_17 : f32 to vector<16x1xf32>
    %23 = arith.divf %21, %22 : vector<16x1xf32>
    %24 = vector.broadcast %16 : vector<16x1xf32> to vector<16x32xf32>
    %25 = arith.subf %0, %24 : vector<16x32xf32>
    %cst_18 = arith.constant 9.99999974E-6 : f32
    %26 = vector.broadcast %cst_18 : f32 to vector<16x1xf32>
    %27 = arith.addf %23, %26 : vector<16x1xf32>
    %28 = math.rsqrt %27 : vector<16x1xf32>
    %29 = vector.broadcast %28 : vector<16x1xf32> to vector<16x32xf32>
    %30 = arith.mulf %25, %29 : vector<16x32xf32>
    %31 = vector.broadcast %1 : vector<1x32xf32> to vector<16x32xf32>
    %32 = arith.mulf %30, %31 : vector<16x32xf32>
    %33 = vector.broadcast %2 : vector<1x32xf32> to vector<16x32xf32>
    %34 = arith.addf %32, %33 : vector<16x32xf32>
    %cst_19 = arith.constant dense<0.000000e+00> : vector<16x96xf32>
    %35 = tpu.matmul %34, %9, %cst_19 {dimension_numbers = #tpu.dot_dimension_numbers<[1], [0], [0], [1], [0, 0, 1, 1], [], []>} : vector<16x32xf32>, vector<32x96xf32>, vector<16x96xf32> -> vector<16x96xf32>
    %36 = vector.broadcast %5 : vector<1x96xf32> to vector<16x96xf32>
    %37 = arith.addf %35, %36 : vector<16x96xf32>
    %cst_20 = arith.constant 0.000000e+00 : f32
    %38 = vector.broadcast %cst_20 : f32 to vector<16x32xf32>
    %39 = vector.extract_strided_slice %37 {offsets = [0, 0], sizes = [16, 8], strides = [1, 1]} : vector<16x96xf32> to vector<16x8xf32>
    %40 = vector.shape_cast %39 : vector<16x8xf32> to vector<2x8x8xf32>
    %41 = vector.extract_strided_slice %37 {offsets = [0, 32], sizes = [16, 8], strides = [1, 1]} : vector<16x96xf32> to vector<16x8xf32>
    %42 = vector.shape_cast %41 : vector<16x8xf32> to vector<2x8x8xf32>
    %43 = vector.extract_strided_slice %37 {offsets = [0, 64], sizes = [16, 8], strides = [1, 1]} : vector<16x96xf32> to vector<16x8xf32>
    %44 = vector.shape_cast %43 : vector<16x8xf32> to vector<2x8x8xf32>
    "tpu.trace_start"() <{level = 10 : i32, message = "bqd,bkd->bqk"}> : () -> ()
    %cst_21 = arith.constant dense<0.000000e+00> : vector<2x8x8xf32>
    %45 = tpu.matmul %40, %42, %cst_21 {dimension_numbers = #tpu.dot_dimension_numbers<[2], [2], [1], [1], [0, 0, 0, 1, 1, 1], [0], [0]>} : vector<2x8x8xf32>, vector<2x8x8xf32>, vector<2x8x8xf32> -> vector<2x8x8xf32>
    "tpu.trace_stop"() : () -> ()
    %cst_22 = arith.constant dense<0xFF800000> : vector<2x8xf32>
    %46 = vector.multi_reduction <maximumf>, %45, %cst_22 [2] : vector<2x8x8xf32> to vector<2x8xf32>
    %47 = vector.shape_cast %46 : vector<2x8xf32> to vector<2x8x1xf32>
    %48 = vector.broadcast %47 : vector<2x8x1xf32> to vector<2x8x8xf32>
    %49 = arith.subf %45, %48 : vector<2x8x8xf32>
    %50 = math.exp %49 : vector<2x8x8xf32>
    %cst_23 = arith.constant dense<0.000000e+00> : vector<2x8xf32>
    %51 = vector.multi_reduction <add>, %50, %cst_23 [2] : vector<2x8x8xf32> to vector<2x8xf32>
    %52 = vector.shape_cast %51 : vector<2x8xf32> to vector<2x8x1xf32>
    %53 = tpu.reciprocal %52 {approx = true} : vector<2x8x1xf32> -> vector<2x8x1xf32>
    %54 = vector.broadcast %53 : vector<2x8x1xf32> to vector<2x8x8xf32>
    %55 = arith.mulf %50, %54 : vector<2x8x8xf32>
    "tpu.trace_start"() <{level = 10 : i32, message = "bqk,bkd->bqd"}> : () -> ()
    %cst_24 = arith.constant dense<0.000000e+00> : vector<2x8x8xf32>
    %56 = tpu.matmul %55, %44, %cst_24 {dimension_numbers = #tpu.dot_dimension_numbers<[2], [1], [1], [2], [0, 0, 0, 1, 1, 2], [0], [0]>} : vector<2x8x8xf32>, vector<2x8x8xf32>, vector<2x8x8xf32> -> vector<2x8x8xf32>
    "tpu.trace_stop"() : () -> ()
    %57 = vector.shape_cast %56 : vector<2x8x8xf32> to vector<16x8xf32>
    %58 = vector.extract_strided_slice %10 {offsets = [0, 0], sizes = [8, 32], strides = [1, 1]} : vector<32x32xf32> to vector<8x32xf32>
    %cst_25 = arith.constant dense<0.000000e+00> : vector<16x32xf32>
    %59 = tpu.matmul %57, %58, %cst_25 {dimension_numbers = #tpu.dot_dimension_numbers<[1], [0], [0], [1], [0, 0, 1, 1], [], []>} : vector<16x8xf32>, vector<8x32xf32>, vector<16x32xf32> -> vector<16x32xf32>
    %60 = arith.addf %38, %59 : vector<16x32xf32>
    %61 = vector.extract_strided_slice %37 {offsets = [0, 8], sizes = [16, 8], strides = [1, 1]} : vector<16x96xf32> to vector<16x8xf32>
    %62 = vector.shape_cast %61 : vector<16x8xf32> to vector<2x8x8xf32>
    %63 = vector.extract_strided_slice %37 {offsets = [0, 40], sizes = [16, 8], strides = [1, 1]} : vector<16x96xf32> to vector<16x8xf32>
    %64 = vector.shape_cast %63 : vector<16x8xf32> to vector<2x8x8xf32>
    %65 = vector.extract_strided_slice %37 {offsets = [0, 72], sizes = [16, 8], strides = [1, 1]} : vector<16x96xf32> to vector<16x8xf32>
    %66 = vector.shape_cast %65 : vector<16x8xf32> to vector<2x8x8xf32>
    "tpu.trace_start"() <{level = 10 : i32, message = "bqd,bkd->bqk"}> : () -> ()
    %cst_26 = arith.constant dense<0.000000e+00> : vector<2x8x8xf32>
    %67 = tpu.matmul %62, %64, %cst_26 {dimension_numbers = #tpu.dot_dimension_numbers<[2], [2], [1], [1], [0, 0, 0, 1, 1, 1], [0], [0]>} : vector<2x8x8xf32>, vector<2x8x8xf32>, vector<2x8x8xf32> -> vector<2x8x8xf32>
    "tpu.trace_stop"() : () -> ()
    %cst_27 = arith.constant dense<0xFF800000> : vector<2x8xf32>
    %68 = vector.multi_reduction <maximumf>, %67, %cst_27 [2] : vector<2x8x8xf32> to vector<2x8xf32>
    %69 = vector.shape_cast %68 : vector<2x8xf32> to vector<2x8x1xf32>
    %70 = vector.broadcast %69 : vector<2x8x1xf32> to vector<2x8x8xf32>
    %71 = arith.subf %67, %70 : vector<2x8x8xf32>
    %72 = math.exp %71 : vector<2x8x8xf32>
    %cst_28 = arith.constant dense<0.000000e+00> : vector<2x8xf32>
    %73 = vector.multi_reduction <add>, %72, %cst_28 [2] : vector<2x8x8xf32> to vector<2x8xf32>
    %74 = vector.shape_cast %73 : vector<2x8xf32> to vector<2x8x1xf32>
    %75 = tpu.reciprocal %74 {approx = true} : vector<2x8x1xf32> -> vector<2x8x1xf32>
    %76 = vector.broadcast %75 : vector<2x8x1xf32> to vector<2x8x8xf32>
    %77 = arith.mulf %72, %76 : vector<2x8x8xf32>
    "tpu.trace_start"() <{level = 10 : i32, message = "bqk,bkd->bqd"}> : () -> ()
    %cst_29 = arith.constant dense<0.000000e+00> : vector<2x8x8xf32>
    %78 = tpu.matmul %77, %66, %cst_29 {dimension_numbers = #tpu.dot_dimension_numbers<[2], [1], [1], [2], [0, 0, 0, 1, 1, 2], [0], [0]>} : vector<2x8x8xf32>, vector<2x8x8xf32>, vector<2x8x8xf32> -> vector<2x8x8xf32>
    "tpu.trace_stop"() : () -> ()
    %79 = vector.shape_cast %78 : vector<2x8x8xf32> to vector<16x8xf32>
    %80 = vector.extract_strided_slice %10 {offsets = [8, 0], sizes = [8, 32], strides = [1, 1]} : vector<32x32xf32> to vector<8x32xf32>
    %cst_30 = arith.constant dense<0.000000e+00> : vector<16x32xf32>
    %81 = tpu.matmul %79, %80, %cst_30 {dimension_numbers = #tpu.dot_dimension_numbers<[1], [0], [0], [1], [0, 0, 1, 1], [], []>} : vector<16x8xf32>, vector<8x32xf32>, vector<16x32xf32> -> vector<16x32xf32>
    %82 = arith.addf %60, %81 : vector<16x32xf32>
    %83 = vector.extract_strided_slice %37 {offsets = [0, 16], sizes = [16, 8], strides = [1, 1]} : vector<16x96xf32> to vector<16x8xf32>
    %84 = vector.shape_cast %83 : vector<16x8xf32> to vector<2x8x8xf32>
    %85 = vector.extract_strided_slice %37 {offsets = [0, 48], sizes = [16, 8], strides = [1, 1]} : vector<16x96xf32> to vector<16x8xf32>
    %86 = vector.shape_cast %85 : vector<16x8xf32> to vector<2x8x8xf32>
    %87 = vector.extract_strided_slice %37 {offsets = [0, 80], sizes = [16, 8], strides = [1, 1]} : vector<16x96xf32> to vector<16x8xf32>
    %88 = vector.shape_cast %87 : vector<16x8xf32> to vector<2x8x8xf32>
    "tpu.trace_start"() <{level = 10 : i32, message = "bqd,bkd->bqk"}> : () -> ()
    %cst_31 = arith.constant dense<0.000000e+00> : vector<2x8x8xf32>
    %89 = tpu.matmul %84, %86, %cst_31 {dimension_numbers = #tpu.dot_dimension_numbers<[2], [2], [1], [1], [0, 0, 0, 1, 1, 1], [0], [0]>} : vector<2x8x8xf32>, vector<2x8x8xf32>, vector<2x8x8xf32> -> vector<2x8x8xf32>
    "tpu.trace_stop"() : () -> ()
    %cst_32 = arith.constant dense<0xFF800000> : vector<2x8xf32>
    %90 = vector.multi_reduction <maximumf>, %89, %cst_32 [2] : vector<2x8x8xf32> to vector<2x8xf32>
    %91 = vector.shape_cast %90 : vector<2x8xf32> to vector<2x8x1xf32>
    %92 = vector.broadcast %91 : vector<2x8x1xf32> to vector<2x8x8xf32>
    %93 = arith.subf %89, %92 : vector<2x8x8xf32>
    %94 = math.exp %93 : vector<2x8x8xf32>
    %cst_33 = arith.constant dense<0.000000e+00> : vector<2x8xf32>
    %95 = vector.multi_reduction <add>, %94, %cst_33 [2] : vector<2x8x8xf32> to vector<2x8xf32>
    %96 = vector.shape_cast %95 : vector<2x8xf32> to vector<2x8x1xf32>
    %97 = tpu.reciprocal %96 {approx = true} : vector<2x8x1xf32> -> vector<2x8x1xf32>
    %98 = vector.broadcast %97 : vector<2x8x1xf32> to vector<2x8x8xf32>
    %99 = arith.mulf %94, %98 : vector<2x8x8xf32>
    "tpu.trace_start"() <{level = 10 : i32, message = "bqk,bkd->bqd"}> : () -> ()
    %cst_34 = arith.constant dense<0.000000e+00> : vector<2x8x8xf32>
    %100 = tpu.matmul %99, %88, %cst_34 {dimension_numbers = #tpu.dot_dimension_numbers<[2], [1], [1], [2], [0, 0, 0, 1, 1, 2], [0], [0]>} : vector<2x8x8xf32>, vector<2x8x8xf32>, vector<2x8x8xf32> -> vector<2x8x8xf32>
    "tpu.trace_stop"() : () -> ()
    %101 = vector.shape_cast %100 : vector<2x8x8xf32> to vector<16x8xf32>
    %102 = vector.extract_strided_slice %10 {offsets = [16, 0], sizes = [8, 32], strides = [1, 1]} : vector<32x32xf32> to vector<8x32xf32>
    %cst_35 = arith.constant dense<0.000000e+00> : vector<16x32xf32>
    %103 = tpu.matmul %101, %102, %cst_35 {dimension_numbers = #tpu.dot_dimension_numbers<[1], [0], [0], [1], [0, 0, 1, 1], [], []>} : vector<16x8xf32>, vector<8x32xf32>, vector<16x32xf32> -> vector<16x32xf32>
    %104 = arith.addf %82, %103 : vector<16x32xf32>
    %105 = vector.extract_strided_slice %37 {offsets = [0, 24], sizes = [16, 8], strides = [1, 1]} : vector<16x96xf32> to vector<16x8xf32>
    %106 = vector.shape_cast %105 : vector<16x8xf32> to vector<2x8x8xf32>
    %107 = vector.extract_strided_slice %37 {offsets = [0, 56], sizes = [16, 8], strides = [1, 1]} : vector<16x96xf32> to vector<16x8xf32>
    %108 = vector.shape_cast %107 : vector<16x8xf32> to vector<2x8x8xf32>
    %109 = vector.extract_strided_slice %37 {offsets = [0, 88], sizes = [16, 8], strides = [1, 1]} : vector<16x96xf32> to vector<16x8xf32>
    %110 = vector.shape_cast %109 : vector<16x8xf32> to vector<2x8x8xf32>
    "tpu.trace_start"() <{level = 10 : i32, message = "bqd,bkd->bqk"}> : () -> ()
    %cst_36 = arith.constant dense<0.000000e+00> : vector<2x8x8xf32>
    %111 = tpu.matmul %106, %108, %cst_36 {dimension_numbers = #tpu.dot_dimension_numbers<[2], [2], [1], [1], [0, 0, 0, 1, 1, 1], [0], [0]>} : vector<2x8x8xf32>, vector<2x8x8xf32>, vector<2x8x8xf32> -> vector<2x8x8xf32>
    "tpu.trace_stop"() : () -> ()
    %cst_37 = arith.constant dense<0xFF800000> : vector<2x8xf32>
    %112 = vector.multi_reduction <maximumf>, %111, %cst_37 [2] : vector<2x8x8xf32> to vector<2x8xf32>
    %113 = vector.shape_cast %112 : vector<2x8xf32> to vector<2x8x1xf32>
    %114 = vector.broadcast %113 : vector<2x8x1xf32> to vector<2x8x8xf32>
    %115 = arith.subf %111, %114 : vector<2x8x8xf32>
    %116 = math.exp %115 : vector<2x8x8xf32>
    %cst_38 = arith.constant dense<0.000000e+00> : vector<2x8xf32>
    %117 = vector.multi_reduction <add>, %116, %cst_38 [2] : vector<2x8x8xf32> to vector<2x8xf32>
    %118 = vector.shape_cast %117 : vector<2x8xf32> to vector<2x8x1xf32>
    %119 = tpu.reciprocal %118 {approx = true} : vector<2x8x1xf32> -> vector<2x8x1xf32>
    %120 = vector.broadcast %119 : vector<2x8x1xf32> to vector<2x8x8xf32>
    %121 = arith.mulf %116, %120 : vector<2x8x8xf32>
    "tpu.trace_start"() <{level = 10 : i32, message = "bqk,bkd->bqd"}> : () -> ()
    %cst_39 = arith.constant dense<0.000000e+00> : vector<2x8x8xf32>
    %122 = tpu.matmul %121, %110, %cst_39 {dimension_numbers = #tpu.dot_dimension_numbers<[2], [1], [1], [2], [0, 0, 0, 1, 1, 2], [0], [0]>} : vector<2x8x8xf32>, vector<2x8x8xf32>, vector<2x8x8xf32> -> vector<2x8x8xf32>
    "tpu.trace_stop"() : () -> ()
    %123 = vector.shape_cast %122 : vector<2x8x8xf32> to vector<16x8xf32>
    %124 = vector.extract_strided_slice %10 {offsets = [24, 0], sizes = [8, 32], strides = [1, 1]} : vector<32x32xf32> to vector<8x32xf32>
    %cst_40 = arith.constant dense<0.000000e+00> : vector<16x32xf32>
    %125 = tpu.matmul %123, %124, %cst_40 {dimension_numbers = #tpu.dot_dimension_numbers<[1], [0], [0], [1], [0, 0, 1, 1], [], []>} : vector<16x8xf32>, vector<8x32xf32>, vector<16x32xf32> -> vector<16x32xf32>
    %126 = arith.addf %104, %125 : vector<16x32xf32>
    %127 = arith.addf %0, %126 : vector<16x32xf32>
    %128 = vector.broadcast %6 : vector<1x32xf32> to vector<16x32xf32>
    %129 = arith.addf %127, %128 : vector<16x32xf32>
    %cst_41 = arith.constant dense<0.000000e+00> : vector<16xf32>
    %130 = vector.multi_reduction <add>, %129, %cst_41 [1] : vector<16x32xf32> to vector<16xf32>
    %131 = vector.shape_cast %130 : vector<16xf32> to vector<16x1xf32>
    %cst_42 = arith.constant 3.200000e+01 : f32
    %132 = vector.broadcast %cst_42 : f32 to vector<16x1xf32>
    %133 = arith.divf %131, %132 : vector<16x1xf32>
    %134 = vector.broadcast %133 : vector<16x1xf32> to vector<16x32xf32>
    %135 = arith.subf %129, %134 : vector<16x32xf32>
    %136 = arith.mulf %135, %135 : vector<16x32xf32>
    %cst_43 = arith.constant dense<0.000000e+00> : vector<16xf32>
    %137 = vector.multi_reduction <add>, %136, %cst_43 [1] : vector<16x32xf32> to vector<16xf32>
    %138 = vector.shape_cast %137 : vector<16xf32> to vector<16x1xf32>
    %cst_44 = arith.constant 3.200000e+01 : f32
    %139 = vector.broadcast %cst_44 : f32 to vector<16x1xf32>
    %140 = arith.divf %138, %139 : vector<16x1xf32>
    %141 = vector.broadcast %133 : vector<16x1xf32> to vector<16x32xf32>
    %142 = arith.subf %129, %141 : vector<16x32xf32>
    %cst_45 = arith.constant 9.99999974E-6 : f32
    %143 = vector.broadcast %cst_45 : f32 to vector<16x1xf32>
    %144 = arith.addf %140, %143 : vector<16x1xf32>
    %145 = math.rsqrt %144 : vector<16x1xf32>
    %146 = vector.broadcast %145 : vector<16x1xf32> to vector<16x32xf32>
    %147 = arith.mulf %142, %146 : vector<16x32xf32>
    %148 = vector.broadcast %3 : vector<1x32xf32> to vector<16x32xf32>
    %149 = arith.mulf %147, %148 : vector<16x32xf32>
    %150 = vector.broadcast %4 : vector<1x32xf32> to vector<16x32xf32>
    %151 = arith.addf %149, %150 : vector<16x32xf32>
    %cst_46 = arith.constant dense<0.000000e+00> : vector<16x64xf32>
    %152 = tpu.matmul %151, %11, %cst_46 {dimension_numbers = #tpu.dot_dimension_numbers<[1], [0], [0], [1], [0, 0, 1, 1], [], []>} : vector<16x32xf32>, vector<32x64xf32>, vector<16x64xf32> -> vector<16x64xf32>
    %153 = vector.broadcast %7 : vector<1x64xf32> to vector<16x64xf32>
    %154 = arith.addf %152, %153 : vector<16x64xf32>
    %155 = arith.mulf %154, %154 : vector<16x64xf32>
    %156 = arith.mulf %154, %155 : vector<16x64xf32>
    %cst_47 = arith.constant 4.471500e-02 : f32
    %157 = vector.broadcast %cst_47 : f32 to vector<16x64xf32>
    %158 = arith.mulf %157, %156 : vector<16x64xf32>
    %159 = arith.addf %154, %158 : vector<16x64xf32>
    %cst_48 = arith.constant 0.797884583 : f32
    %160 = vector.broadcast %cst_48 : f32 to vector<16x64xf32>
    %161 = arith.mulf %160, %159 : vector<16x64xf32>
    %162 = math.tanh %161 : vector<16x64xf32>
    %cst_49 = arith.constant 1.000000e+00 : f32
    %163 = vector.broadcast %cst_49 : f32 to vector<16x64xf32>
    %164 = arith.addf %163, %162 : vector<16x64xf32>
    %cst_50 = arith.constant 5.000000e-01 : f32
    %165 = vector.broadcast %cst_50 : f32 to vector<16x64xf32>
    %166 = arith.mulf %165, %164 : vector<16x64xf32>
    %167 = arith.mulf %154, %166 : vector<16x64xf32>
    %cst_51 = arith.constant dense<0.000000e+00> : vector<16x32xf32>
    %168 = tpu.matmul %167, %12, %cst_51 {dimension_numbers = #tpu.dot_dimension_numbers<[1], [0], [0], [1], [0, 0, 1, 1], [], []>} : vector<16x64xf32>, vector<64x32xf32>, vector<16x32xf32> -> vector<16x32xf32>
    %169 = arith.addf %129, %168 : vector<16x32xf32>
    %170 = vector.broadcast %8 : vector<1x32xf32> to vector<16x32xf32>
    %171 = arith.addf %169, %170 : vector<16x32xf32>
    %c0_52 = arith.constant 0 : index
    %c0_53 = arith.constant 0 : index
    %172 = vector.load %arg3[%c0_52, %c0_53] : memref<16x32xf32, #tpu.memory_space<vmem>>, vector<16x32xf32>
    tpu.vector_store %arg3[%c0_52, %c0_53], %171 {strides = array<i32>} : memref<16x32xf32, #tpu.memory_space<vmem>>, vector<16x32xf32>,
    return
  }
}

</mosaic_0001>

<llo_original>
// kernel: encoder_block.1
$region0: #{encoder_block.1}
  #allocation0 [shape = 'u32[]', space=smem, size = 0x4, offset = 0x4, fixed_abs, tag = 'smem constant byte address 0x4 - core index']
  #allocation1 [shape = 'u32[144,128]{1,0:T(1,128)}', space=vmem, size = 0x12000, scoped, tag = 'internal scratch']
  %s0 = inlined_call_operand.hbm [shape: f32[16,32], index: 0, kind: input, shape index: {}]
  %s1 = inlined_call_operand.hbm [shape: f32[160,128], index: 1, kind: input, shape index: {}]
  %s2 = inlined_call_operand.vmem [shape: f32[8,128], index: 2, kind: input, shape index: {}]
  %s3 = inlined_call_operand.hbm [shape: f32[16,32], index: 3, kind: output, shape index: {}]
  %s4 = sld [smem:[#allocation0]]
  $region30: #{encoder_block.1} parent=0
    _
  %s6 = ssub.s32 1, %s4
  %s7 = scalar_select 0, %s6, %s4
  $region1: #{encoder_block.1} parent=0
    #allocation2 [shape = 'u8[8192]{0}', space=vmem, size = 0x2000, scoped, tag = 'input window, operand 0, single buffered']
    #allocation3 [shape = 's32[1]{0}', space=sflag, size = 0x4, scoped, tag = 'scoped memory for encoder_block.1']
    #allocation4 [shape = 's32[1]{0}', space=sflag, size = 0x4, scoped, tag = 'scoped memory for encoder_block.1']
    #allocation5 [shape = 'u8[81920]{0}', space=vmem, size = 0x14000, scoped, tag = 'input window, operand 1, single buffered']
    #allocation6 [shape = 's32[1]{0}', space=sflag, size = 0x4, scoped, tag = 'scoped memory for encoder_block.1']
    #allocation7 [shape = 'u8[8192]{0}', space=vmem, size = 0x2000, scoped, tag = 'output window, operand 0, single buffered']
    %8 = vsyncpa [#allocation3], 0
    %9 = vsyncpa [#allocation6], 0
    %10 = vsyncpa [#allocation4], 0
    // Predicated region
    $region2: #{encoder_block.1} parent=1 // pred_check
      _
    $region3: #{encoder_block.1} parent=1 // pred_check_branch
      %12 = sbr.rel (0) target = $region5
    $region4: #{encoder_block.1} parent=1 // pred_region
      %s14 = ssub.s32 256, 256
      %15 = vsyncadd [#allocation3], %s14
      %s16 = sshll.u32 [#allocation2], 4
      %s17 = int_to_ptr.vmem [resolvable:$true] %s16
      %22 = dma.hbm_to_vmem [thread:$0]  %s0, 256, %s17, [#allocation3], 128, 128, 8
    $region5: #{encoder_block.1} parent=1 // pred_fallthru
      _
    // Predicated region
    $region6: #{encoder_block.1} parent=1 // pred_check
      _
    $region7: #{encoder_block.1} parent=1 // pred_check_branch
      %24 = sbr.rel (0) target = $region9
    $region8: #{encoder_block.1} parent=1 // pred_region
      %s26 = ssub.s32 2560, 2560
      %27 = vsyncadd [#allocation6], %s26
      %s28 = sshll.u32 [#allocation5], 4
      %s29 = int_to_ptr.vmem [resolvable:$true] %s28
      %34 = dma.hbm_to_vmem [thread:$0]  %s1, 2560, %s29, [#allocation6], 128, 128, 8
    $region9: #{encoder_block.1} parent=1 // pred_fallthru
      _
    // Predicated region
    $region10: #{encoder_block.1} parent=1 // pred_check
      _
    $region11: #{encoder_block.1} parent=1 // pred_check_branch
      %36 = sbr.rel (0) target = $region13
    $region12: #{encoder_block.1} parent=1 // pred_region
      _
    $region13: #{encoder_block.1} parent=1 // pred_fallthru
      _
    // Predicated region
    $region14: #{encoder_block.1} parent=1 // pred_check
      _
    $region15: #{encoder_block.1} parent=1 // pred_check_branch
      %38 = sbr.rel (0) target = $region17
    $region16: #{encoder_block.1} parent=1 // pred_region
      %39 = dma.done [#allocation3], 256
    $region17: #{encoder_block.1} parent=1 // pred_fallthru
      _
    // Predicated region
    $region18: #{encoder_block.1} parent=1 // pred_check
      _
    $region19: #{encoder_block.1} parent=1 // pred_check_branch
      %41 = sbr.rel (0) target = $region21
    $region20: #{encoder_block.1} parent=1 // pred_region
      %42 = dma.done [#allocation6], 2560
    $region21: #{encoder_block.1} parent=1 // pred_fallthru
      _
    %v43 = vld [vmem:[#allocation2] sm:$0xff]
    %v44 = vld [vmem:[#allocation2 + $0x8] sm:$0xff]
    %v45 = vld [vmem:[%s2] sm:$0x1]
    %v46 = vld [vmem:[%s2 + $0x1] sm:$0x1]
    %v47 = vld [vmem:[%s2 + $0x2] sm:$0x1]
    %v48 = vld [vmem:[%s2 + $0x3] sm:$0x1]
    %v49 = vld [vmem:[%s2 + $0x4] sm:$0x1]
    %v50 = vld [vmem:[%s2 + $0x5] sm:$0x1]
    %v51 = vld [vmem:[%s2 + $0x6] sm:$0x1]
    %v52 = vld [vmem:[%s2 + $0x7] sm:$0x1]
    %v53 = vld [vmem:[#allocation5] sm:$0xff]
    %v54 = vld [vmem:[#allocation5 + $0x8] sm:$0xff]
    %v55 = vld [vmem:[#allocation5 + $0x10] sm:$0xff]
    %v56 = vld [vmem:[#allocation5 + $0x18] sm:$0xff]
    %v57 = vld [vmem:[#allocation5 + $0x20] sm:$0xff]
    %v58 = vld [vmem:[#allocation5 + $0x28] sm:$0xff]
    %v59 = vld [vmem:[#allocation5 + $0x30] sm:$0xff]
    %v60 = vld [vmem:[#allocation5 + $0x38] sm:$0xff]
    %v61 = vld [vmem:[#allocation5 + $0x40] sm:$0xff]
    %v62 = vld [vmem:[#allocation5 + $0x48] sm:$0xff]
    %v63 = vld [vmem:[#allocation5 + $0x50] sm:$0xff]
    %v64 = vld [vmem:[#allocation5 + $0x58] sm:$0xff]
    %v65 = vld [vmem:[#allocation5 + $0x60] sm:$0xff]
    %v66 = vld [vmem:[#allocation5 + $0x68] sm:$0xff]
    %v67 = vld [vmem:[#allocation5 + $0x70] sm:$0xff]
    %v68 = vld [vmem:[#allocation5 + $0x78] sm:$0xff]
    %v69 = vld [vmem:[#allocation5 + $0x80] sm:$0xff]
    %v70 = vld [vmem:[#allocation5 + $0x88] sm:$0xff]
    %v71 = vld [vmem:[#allocation5 + $0x90] sm:$0xff]
    %v72 = vld [vmem:[#allocation5 + $0x98] sm:$0xff]
    %vm73 = vcmask 261120
    %v74 = vsel %vm73, %v43, 0.0
    %75 = vadd.xlane.f32.xlu0 %v74
    %v76 = vpop.xlane.xlu0 %75
    %v77 = vsel %vm73, %v44, 0.0
    %78 = vadd.xlane.f32.xlu0 %v77
    %v79 = vpop.xlane.xlu0 %78
    %v80 = vrcp.pop 32.0
    %v81 = vmul.f32 %v76, %v80
    %v82 = vmul.f32 %v79, %v80
    %v83 = vsub.f32 %v43, %v81
    %v84 = vsub.f32 %v44, %v82
    %v85 = vmul.f32 %v83, %v83
    %v86 = vmul.f32 %v84, %v84
    %v87 = vsel %vm73, %v85, 0.0
    %88 = vadd.xlane.f32.xlu0 %v87
    %v89 = vpop.xlane.xlu0 %88
    %v90 = vsel %vm73, %v86, 0.0
    %91 = vadd.xlane.f32.xlu0 %v90
    %v92 = vpop.xlane.xlu0 %91
    %v93 = vmul.f32 %v89, %v80
    %v94 = vmul.f32 %v92, %v80
    %v95 = vadd.f32 %v93, 1e-05
    %v96 = vadd.f32 %v94, 1e-05
    %v97 = vrsqrt.pop %v95
    %v98 = vrsqrt.pop %v96
    %v99 = vmul.f32 %v83, %v97
    %v100 = vmul.f32 %v84, %v98
    %v101 = vlaneseq
    %v102 = vshrl.u32 %v101, 7
    %v103 = vsub.s32 0, %v102
    %v104 = vrot.slane %v45, %v103
    %v105 = vmul.f32 %v99, %v104
    %v106 = vmul.f32 %v100, %v104
    %v107 = vlaneseq
    %v108 = vshrl.u32 %v107, 7
    %v109 = vsub.s32 0, %v108
    %v110 = vrot.slane %v46, %v109
    %v111 = vadd.f32 %v105, %v110
    %v112 = vadd.f32 %v106, %v110
    %v113 = vlaneseq
    %v114 = vshrl.u32 %v113, 7
    %v115 = vsub.s32 0, %v114
    %v116 = vrot.slane %v49, %v115
    %v118 = vsel %vm73, %v111, 0
    %v121 = vsel %vm73, %v112, 0
    %123 = vmatprep.subr.mxu0 0.0
    %124 = vmatpush1.msra.mxu0 %v53
    %125 = vmatprep.subr.mxu0 0.0
    %126 = vmatpush1.msra.mxu0 %v54
    %127 = vmatprep.subr.mxu0 0.0
    %128 = vmatpush1.msra.mxu0 %v55
    %129 = vmatprep.subr.mxu0 0.0
    %130 = vmatpush1.msra.mxu0 %v56
    %131 = vmatprep.subr.mxu0 0.0
    %132 = vmatpush1.msra.mxu0 0.0
    %133 = vmatprep.subr.mxu0 0.0
    %134 = vmatpush1.msra.mxu0 0.0
    %135 = vmatprep.subr.mxu0 0.0
    %136 = vmatpush1.msra.mxu0 0.0
    %137 = vmatprep.subr.mxu0 0.0
    %138 = vmatpush1.msra.mxu0 0.0
    %139 = vmatprep.subr.mxu0 0.0
    %140 = vmatpush1.msra.mxu0 0.0
    %141 = vmatprep.subr.mxu0 0.0
    %142 = vmatpush1.msra.mxu0 0.0
    %143 = vmatprep.subr.mxu0 0.0
    %144 = vmatpush1.msra.mxu0 0.0
    %145 = vmatprep.subr.mxu0 0.0
    %146 = vmatpush1.msra.mxu0 0.0
    %147 = vmatprep.subr.mxu0 0.0
    %148 = vmatpush1.msra.mxu0 0.0
    %149 = vmatprep.subr.mxu0 0.0
    %150 = vmatpush1.msra.mxu0 0.0
    %151 = vmatprep.subr.mxu0 0.0
    %152 = vmatpush1.msra.mxu0 0.0
    %153 = vmatprep.subr.mxu0 0.0
    %154 = vmatpush1.msra.mxu0 0.0
    %155 = vmatprep.subr.mxu0 0.0
    %156 = vmatpush1.msra.mxu0 0.0
    %157 = vmatprep.subr.mxu0 0.0
    %158 = vmatpush1.msra.mxu0 0.0
    %159 = vmatprep.subr.mxu0 0.0
    %160 = vmatpush1.msra.mxu0 0.0
    %161 = vmatprep.subr.mxu0 0.0
    %162 = vmatpush1.msra.mxu0 0.0
    %163 = vmatprep.subr.mxu0 0.0
    %164 = vmatpush1.msra.mxu0 0.0
    %165 = vmatprep.subr.mxu0 0.0
    %166 = vmatpush1.msra.mxu0 0.0
    %167 = vmatprep.subr.mxu0 0.0
    %168 = vmatpush1.msra.mxu0 0.0
    %169 = vmatprep.subr.mxu0 0.0
    %170 = vmatpush1.msra.mxu0 0.0
    %171 = vmatprep.subr.mxu0 0.0
    %172 = vmatpush1.msra.mxu0 0.0
    %173 = vmatprep.subr.mxu0 0.0
    %174 = vmatpush1.msra.mxu0 0.0
    %175 = vmatprep.subr.mxu0 0.0
    %176 = vmatpush1.msra.mxu0 0.0
    %177 = vmatprep.subr.mxu0 0.0
    %178 = vmatpush1.msra.mxu0 0.0
    %179 = vmatprep.subr.mxu0 0.0
    %180 = vmatpush1.msra.mxu0 0.0
    %181 = vmatprep.subr.mxu0 0.0
    %182 = vmatpush1.msra.mxu0 0.0
    %183 = vmatprep.subr.mxu0 0.0
    %184 = vmatpush1.msra.mxu0 0.0
    %185 = vmatprep.subr.mxu0 0.0
    %186 = vmatpush1.msra.mxu0 0.0
    %187 = vmatprep.mubr.f32.mxu0 0.0
    %188 = vmatmul.mubr.f32.gmra.mrb[0].mxu0 %v118
    %v189 = vpop.f32.mrb[0].mxu0
    %v190 = vadd.f32 %v116, %v189
    %v191 = vpop.f32.mrb[0].mxu0
    %192 = vmatprep.mubr.f32.mxu0 0.0
    %193 = vmatmul.mubr.f32.gmra.mrb[0].mxu0 %v121
    %v194 = vpop.f32.mrb[0].mxu0
    %v195 = vadd.f32 %v116, %v194
    %v196 = vpop.f32.mrb[0].mxu0
    %197 = vdwg.mxu0
    %199 = vrot.lane.b32.xlu0 %v190, 96
    %v200 = vpop.permute.xlu0 %199
    %vm201 = vcmask 64512
    %v202 = vsel %vm201, %v190, 0
    %v204 = vsel %vm201, %v200, 0
    %206 = vmatprep.subr.mxu0 0.0
    %207 = vmatpush1.xpose.msra.mxu0 %v204
    %208 = vmatprep.subr.mxu0 0.0
    %209 = vmatpush1.xpose.msra.mxu0 0.0
    %210 = vmatprep.subr.mxu0 0.0
    %211 = vmatpush1.xpose.msra.mxu0 0.0
    %212 = vmatprep.subr.mxu0 0.0
    %213 = vmatpush1.xpose.msra.mxu0 0.0
    %214 = vmatprep.subr.mxu0 0.0
    %215 = vmatpush1.xpose.msra.mxu0 0.0
    %216 = vmatprep.subr.mxu0 0.0
    %217 = vmatpush1.xpose.msra.mxu0 0.0
    %218 = vmatprep.subr.mxu0 0.0
    %219 = vmatpush1.xpose.msra.mxu0 0.0
    %220 = vmatprep.subr.mxu0 0.0
    %221 = vmatpush1.xpose.msra.mxu0 0.0
    %222 = vmatprep.subr.mxu0 0.0
    %223 = vmatpush1.xpose.msra.mxu0 0.0
    %224 = vmatprep.subr.mxu0 0.0
    %225 = vmatpush1.xpose.msra.mxu0 0.0
    %226 = vmatprep.subr.mxu0 0.0
    %227 = vmatpush1.xpose.msra.mxu0 0.0
    %228 = vmatprep.subr.mxu0 0.0
    %229 = vmatpush1.xpose.msra.mxu0 0.0
    %230 = vmatprep.subr.mxu0 0.0
    %231 = vmatpush1.xpose.msra.mxu0 0.0
    %232 = vmatprep.subr.mxu0 0.0
    %233 = vmatpush1.xpose.msra.mxu0 0.0
    %234 = vmatprep.subr.mxu0 0.0
    %235 = vmatpush1.xpose.msra.mxu0 0.0
    %236 = vmatprep.subr.mxu0 0.0
    %237 = vmatpush1.xpose.msra.mxu0 0.0
    %238 = vmatprep.subr.mxu0 0.0
    %239 = vmatpush1.xpose.msra.mxu0 0.0
    %240 = vmatprep.subr.mxu0 0.0
    %241 = vmatpush1.xpose.msra.mxu0 0.0
    %242 = vmatprep.subr.mxu0 0.0
    %243 = vmatpush1.xpose.msra.mxu0 0.0
    %244 = vmatprep.subr.mxu0 0.0
    %245 = vmatpush1.xpose.msra.mxu0 0.0
    %246 = vmatprep.subr.mxu0 0.0
    %247 = vmatpush1.xpose.msra.mxu0 0.0
    %248 = vmatprep.subr.mxu0 0.0
    %249 = vmatpush1.xpose.msra.mxu0 0.0
    %250 = vmatprep.subr.mxu0 0.0
    %251 = vmatpush1.xpose.msra.mxu0 0.0
    %252 = vmatprep.subr.mxu0 0.0
    %253 = vmatpush1.xpose.msra.mxu0 0.0
    %254 = vmatprep.subr.mxu0 0.0
    %255 = vmatpush1.xpose.msra.mxu0 0.0
    %256 = vmatprep.subr.mxu0 0.0
    %257 = vmatpush1.xpose.msra.mxu0 0.0
    %258 = vmatprep.subr.mxu0 0.0
    %259 = vmatpush1.xpose.msra.mxu0 0.0
    %260 = vmatprep.subr.mxu0 0.0
    %261 = vmatpush1.xpose.msra.mxu0 0.0
    %262 = vmatprep.subr.mxu0 0.0
    %263 = vmatpush1.xpose.msra.mxu0 0.0
    %264 = vmatprep.subr.mxu0 0.0
    %265 = vmatpush1.xpose.msra.mxu0 0.0
    %266 = vmatprep.subr.mxu0 0.0
    %267 = vmatpush1.xpose.msra.mxu0 0.0
    %268 = vmatprep.subr.mxu0 0.0
    %269 = vmatpush1.xpose.msra.mxu0 0.0
    %270 = vmatprep.mubr.f32.mxu0 0.0
    %271 = vmatmul.mubr.f32.gmra.mrb[0].mxu0 %v202
    %v272 = vpop.f32.mrb[0].mxu0
    %v273 = vadd.f32 0.0, %v272
    %v274 = vpop.f32.mrb[0].mxu0
    %275 = vdwg.mxu0
    %277 = vrot.lane.b32.xlu0 %v195, 96
    %v278 = vpop.permute.xlu0 %277
    %v279 = vsel %vm201, %v195, 0
    %v281 = vsel %vm201, %v278, 0
    %283 = vmatprep.subr.mxu0 0.0
    %284 = vmatpush1.xpose.msra.mxu0 %v281
    %285 = vmatprep.subr.mxu0 0.0
    %286 = vmatpush1.xpose.msra.mxu0 0.0
    %287 = vmatprep.subr.mxu0 0.0
    %288 = vmatpush1.xpose.msra.mxu0 0.0
    %289 = vmatprep.subr.mxu0 0.0
    %290 = vmatpush1.xpose.msra.mxu0 0.0
    %291 = vmatprep.subr.mxu0 0.0
    %292 = vmatpush1.xpose.msra.mxu0 0.0
    %293 = vmatprep.subr.mxu0 0.0
    %294 = vmatpush1.xpose.msra.mxu0 0.0
    %295 = vmatprep.subr.mxu0 0.0
    %296 = vmatpush1.xpose.msra.mxu0 0.0
    %297 = vmatprep.subr.mxu0 0.0
    %298 = vmatpush1.xpose.msra.mxu0 0.0
    %299 = vmatprep.subr.mxu0 0.0
    %300 = vmatpush1.xpose.msra.mxu0 0.0
    %301 = vmatprep.subr.mxu0 0.0
    %302 = vmatpush1.xpose.msra.mxu0 0.0
    %303 = vmatprep.subr.mxu0 0.0
    %304 = vmatpush1.xpose.msra.mxu0 0.0
    %305 = vmatprep.subr.mxu0 0.0
    %306 = vmatpush1.xpose.msra.mxu0 0.0
    %307 = vmatprep.subr.mxu0 0.0
    %308 = vmatpush1.xpose.msra.mxu0 0.0
    %309 = vmatprep.subr.mxu0 0.0
    %310 = vmatpush1.xpose.msra.mxu0 0.0
    %311 = vmatprep.subr.mxu0 0.0
    %312 = vmatpush1.xpose.msra.mxu0 0.0
    %313 = vmatprep.subr.mxu0 0.0
    %314 = vmatpush1.xpose.msra.mxu0 0.0
    %315 = vmatprep.subr.mxu0 0.0
    %316 = vmatpush1.xpose.msra.mxu0 0.0
    %317 = vmatprep.subr.mxu0 0.0
    %318 = vmatpush1.xpose.msra.mxu0 0.0
    %319 = vmatprep.subr.mxu0 0.0
    %320 = vmatpush1.xpose.msra.mxu0 0.0
    %321 = vmatprep.subr.mxu0 0.0
    %322 = vmatpush1.xpose.msra.mxu0 0.0
    %323 = vmatprep.subr.mxu0 0.0
    %324 = vmatpush1.xpose.msra.mxu0 0.0
    %325 = vmatprep.subr.mxu0 0.0
    %326 = vmatpush1.xpose.msra.mxu0 0.0
    %327 = vmatprep.subr.mxu0 0.0
    %328 = vmatpush1.xpose.msra.mxu0 0.0
    %329 = vmatprep.subr.mxu0 0.0
    %330 = vmatpush1.xpose.msra.mxu0 0.0
    %331 = vmatprep.subr.mxu0 0.0
    %332 = vmatpush1.xpose.msra.mxu0 0.0
    %333 = vmatprep.subr.mxu0 0.0
    %334 = vmatpush1.xpose.msra.mxu0 0.0
    %335 = vmatprep.subr.mxu0 0.0
    %336 = vmatpush1.xpose.msra.mxu0 0.0
    %337 = vmatprep.subr.mxu0 0.0
    %338 = vmatpush1.xpose.msra.mxu0 0.0
    %339 = vmatprep.subr.mxu0 0.0
    %340 = vmatpush1.xpose.msra.mxu0 0.0
    %341 = vmatprep.subr.mxu0 0.0
    %342 = vmatpush1.xpose.msra.mxu0 0.0
    %343 = vmatprep.subr.mxu0 0.0
    %344 = vmatpush1.xpose.msra.mxu0 0.0
    %345 = vmatprep.subr.mxu0 0.0
    %346 = vmatpush1.xpose.msra.mxu0 0.0
    %347 = vmatprep.mubr.f32.mxu0 0.0
    %348 = vmatmul.mubr.f32.gmra.mrb[0].mxu0 %v279
    %v349 = vpop.f32.mrb[0].mxu0
    %v350 = vadd.f32 0.0, %v349
    %v351 = vpop.f32.mrb[0].mxu0
    %352 = vdwg.mxu0
    %v353 = vsel %vm201, %v273, -inf
    %354 = vmax.xlane.f32.xlu0 %v353
    %v355 = vpop.xlane.xlu0 %354
    %v356 = vsel %vm201, %v350, -inf
    %357 = vmax.xlane.f32.xlu0 %v356
    %v358 = vpop.xlane.xlu0 %357
    %v359 = vsub.f32 %v273, %v355
    %v360 = vsub.f32 %v350, %v358
    %v361 = vmul.f32 %v359, 1.442695
    %v362 = vpow.pop %v361
    %v363 = vmul.f32 %v360, 1.442695
    %v364 = vpow.pop %v363
    %v365 = vsel %vm201, %v362, 0.0
    %366 = vadd.xlane.f32.xlu0 %v365
    %v367 = vpop.xlane.xlu0 %366
    %v368 = vsel %vm201, %v364, 0.0
    %369 = vadd.xlane.f32.xlu0 %v368
    %v370 = vpop.xlane.xlu0 %369
    %v371 = vrcp.pop %v367
    %v372 = vrcp.pop %v370
    %v373 = vmul.f32 %v362, %v371
    %v374 = vmul.f32 %v364, %v372
    %375 = vrot.lane.b32.xlu0 %v190, 64
    %v376 = vpop.permute.xlu0 %375
    %v379 = vsel %vm201, %v373, 0
    %381 = vmatprep.subr.mxu0 0.0
    %382 = vmatpush1.msra.mxu0 %v376
    %383 = vmatprep.subr.mxu0 0.0
    %384 = vmatpush1.msra.mxu0 0.0
    %385 = vmatprep.subr.mxu0 0.0
    %386 = vmatpush1.msra.mxu0 0.0
    %387 = vmatprep.subr.mxu0 0.0
    %388 = vmatpush1.msra.mxu0 0.0
    %389 = vmatprep.subr.mxu0 0.0
    %390 = vmatpush1.msra.mxu0 0.0
    %391 = vmatprep.subr.mxu0 0.0
    %392 = vmatpush1.msra.mxu0 0.0
    %393 = vmatprep.subr.mxu0 0.0
    %394 = vmatpush1.msra.mxu0 0.0
    %395 = vmatprep.subr.mxu0 0.0
    %396 = vmatpush1.msra.mxu0 0.0
    %397 = vmatprep.subr.mxu0 0.0
    %398 = vmatpush1.msra.mxu0 0.0
    %399 = vmatprep.subr.mxu0 0.0
    %400 = vmatpush1.msra.mxu0 0.0
    %401 = vmatprep.subr.mxu0 0.0
    %402 = vmatpush1.msra.mxu0 0.0
    %403 = vmatprep.subr.mxu0 0.0
    %404 = vmatpush1.msra.mxu0 0.0
    %405 = vmatprep.subr.mxu0 0.0
    %406 = vmatpush1.msra.mxu0 0.0
    %407 = vmatprep.subr.mxu0 0.0
    %408 = vmatpush1.msra.mxu0 0.0
    %409 = vmatprep.subr.mxu0 0.0
    %410 = vmatpush1.msra.mxu0 0.0
    %411 = vmatprep.subr.mxu0 0.0
    %412 = vmatpush1.msra.mxu0 0.0
    %413 = vmatprep.subr.mxu0 0.0
    %414 = vmatpush1.msra.mxu0 0.0
    %415 = vmatprep.subr.mxu0 0.0
    %416 = vmatpush1.msra.mxu0 0.0
    %417 = vmatprep.subr.mxu0 0.0
    %418 = vmatpush1.msra.mxu0 0.0
    %419 = vmatprep.subr.mxu0 0.0
    %420 = vmatpush1.msra.mxu0 0.0
    %421 = vmatprep.subr.mxu0 0.0
    %422 = vmatpush1.msra.mxu0 0.0
    %423 = vmatprep.subr.mxu0 0.0
    %424 = vmatpush1.msra.mxu0 0.0
    %425 = vmatprep.subr.mxu0 0.0
    %426 = vmatpush1.msra.mxu0 0.0
    %427 = vmatprep.subr.mxu0 0.0
    %428 = vmatpush1.msra.mxu0 0.0
    %429 = vmatprep.subr.mxu0 0.0
    %430 = vmatpush1.msra.mxu0 0.0
    %431 = vmatprep.subr.mxu0 0.0
    %432 = vmatpush1.msra.mxu0 0.0
    %433 = vmatprep.subr.mxu0 0.0
    %434 = vmatpush1.msra.mxu0 0.0
    %435 = vmatprep.subr.mxu0 0.0
    %436 = vmatpush1.msra.mxu0 0.0
    %437 = vmatprep.subr.mxu0 0.0
    %438 = vmatpush1.msra.mxu0 0.0
    %439 = vmatprep.subr.mxu0 0.0
    %440 = vmatpush1.msra.mxu0 0.0
    %441 = vmatprep.subr.mxu0 0.0
    %442 = vmatpush1.msra.mxu0 0.0
    %443 = vmatprep.subr.mxu0 0.0
    %444 = vmatpush1.msra.mxu0 0.0
    %445 = vmatprep.mubr.f32.mxu0 0.0
    %446 = vmatmul.mubr.f32.gmra.mrb[0].mxu0 %v379
    %v447 = vpop.f32.mrb[0].mxu0
    %v448 = vadd.f32 0.0, %v447
    %v449 = vpop.f32.mrb[0].mxu0
    %450 = vdwg.mxu0
    %451 = vrot.lane.b32.xlu0 %v195, 64
    %v452 = vpop.permute.xlu0 %451
    %v455 = vsel %vm201, %v374, 0
    %457 = vmatprep.subr.mxu0 0.0
    %458 = vmatpush1.msra.mxu0 %v452
    %459 = vmatprep.subr.mxu0 0.0
    %460 = vmatpush1.msra.mxu0 0.0
    %461 = vmatprep.subr.mxu0 0.0
    %462 = vmatpush1.msra.mxu0 0.0
    %463 = vmatprep.subr.mxu0 0.0
    %464 = vmatpush1.msra.mxu0 0.0
    %465 = vmatprep.subr.mxu0 0.0
    %466 = vmatpush1.msra.mxu0 0.0
    %467 = vmatprep.subr.mxu0 0.0
    %468 = vmatpush1.msra.mxu0 0.0
    %469 = vmatprep.subr.mxu0 0.0
    %470 = vmatpush1.msra.mxu0 0.0
    %471 = vmatprep.subr.mxu0 0.0
    %472 = vmatpush1.msra.mxu0 0.0
    %473 = vmatprep.subr.mxu0 0.0
    %474 = vmatpush1.msra.mxu0 0.0
    %475 = vmatprep.subr.mxu0 0.0
    %476 = vmatpush1.msra.mxu0 0.0
    %477 = vmatprep.subr.mxu0 0.0
    %478 = vmatpush1.msra.mxu0 0.0
    %479 = vmatprep.subr.mxu0 0.0
    %480 = vmatpush1.msra.mxu0 0.0
    %481 = vmatprep.subr.mxu0 0.0
    %482 = vmatpush1.msra.mxu0 0.0
    %483 = vmatprep.subr.mxu0 0.0
    %484 = vmatpush1.msra.mxu0 0.0
    %485 = vmatprep.subr.mxu0 0.0
    %486 = vmatpush1.msra.mxu0 0.0
    %487 = vmatprep.subr.mxu0 0.0
    %488 = vmatpush1.msra.mxu0 0.0
    %489 = vmatprep.subr.mxu0 0.0
    %490 = vmatpush1.msra.mxu0 0.0
    %491 = vmatprep.subr.mxu0 0.0
    %492 = vmatpush1.msra.mxu0 0.0
    %493 = vmatprep.subr.mxu0 0.0
    %494 = vmatpush1.msra.mxu0 0.0
    %495 = vmatprep.subr.mxu0 0.0
    %496 = vmatpush1.msra.mxu0 0.0
    %497 = vmatprep.subr.mxu0 0.0
    %498 = vmatpush1.msra.mxu0 0.0
    %499 = vmatprep.subr.mxu0 0.0
    %500 = vmatpush1.msra.mxu0 0.0
    %501 = vmatprep.subr.mxu0 0.0
    %502 = vmatpush1.msra.mxu0 0.0
    %503 = vmatprep.subr.mxu0 0.0
    %504 = vmatpush1.msra.mxu0 0.0
    %505 = vmatprep.subr.mxu0 0.0
    %506 = vmatpush1.msra.mxu0 0.0
    %507 = vmatprep.subr.mxu0 0.0
    %508 = vmatpush1.msra.mxu0 0.0
    %509 = vmatprep.subr.mxu0 0.0
    %510 = vmatpush1.msra.mxu0 0.0
    %511 = vmatprep.subr.mxu0 0.0
    %512 = vmatpush1.msra.mxu0 0.0
    %513 = vmatprep.subr.mxu0 0.0
    %514 = vmatpush1.msra.mxu0 0.0
    %515 = vmatprep.subr.mxu0 0.0
    %516 = vmatpush1.msra.mxu0 0.0
    %517 = vmatprep.subr.mxu0 0.0
    %518 = vmatpush1.msra.mxu0 0.0
    %519 = vmatprep.subr.mxu0 0.0
    %520 = vmatpush1.msra.mxu0 0.0
    %521 = vmatprep.mubr.f32.mxu0 0.0
    %522 = vmatmul.mubr.f32.gmra.mrb[0].mxu0 %v455
    %v523 = vpop.f32.mrb[0].mxu0
    %v524 = vadd.f32 0.0, %v523
    %v525 = vpop.f32.mrb[0].mxu0
    %526 = vdwg.mxu0
    %527 = vrot.lane.b32.xlu0 %v190, 120
    %v528 = vpop.permute.xlu0 %527
    %529 = vrot.lane.b32.xlu0 %v190, 88
    %v530 = vpop.permute.xlu0 %529
    %v531 = vsel %vm201, %v528, 0
    %v533 = vsel %vm201, %v530, 0
    %535 = vmatprep.subr.mxu0 0.0
    %536 = vmatpush1.xpose.msra.mxu0 %v533
    %537 = vmatprep.subr.mxu0 0.0
    %538 = vmatpush1.xpose.msra.mxu0 0.0
    %539 = vmatprep.subr.mxu0 0.0
    %540 = vmatpush1.xpose.msra.mxu0 0.0
    %541 = vmatprep.subr.mxu0 0.0
    %542 = vmatpush1.xpose.msra.mxu0 0.0
    %543 = vmatprep.subr.mxu0 0.0
    %544 = vmatpush1.xpose.msra.mxu0 0.0
    %545 = vmatprep.subr.mxu0 0.0
    %546 = vmatpush1.xpose.msra.mxu0 0.0
    %547 = vmatprep.subr.mxu0 0.0
    %548 = vmatpush1.xpose.msra.mxu0 0.0
    %549 = vmatprep.subr.mxu0 0.0
    %550 = vmatpush1.xpose.msra.mxu0 0.0
    %551 = vmatprep.subr.mxu0 0.0
    %552 = vmatpush1.xpose.msra.mxu0 0.0
    %553 = vmatprep.subr.mxu0 0.0
    %554 = vmatpush1.xpose.msra.mxu0 0.0
    %555 = vmatprep.subr.mxu0 0.0
    %556 = vmatpush1.xpose.msra.mxu0 0.0
    %557 = vmatprep.subr.mxu0 0.0
    %558 = vmatpush1.xpose.msra.mxu0 0.0
    %559 = vmatprep.subr.mxu0 0.0
    %560 = vmatpush1.xpose.msra.mxu0 0.0
    %561 = vmatprep.subr.mxu0 0.0
    %562 = vmatpush1.xpose.msra.mxu0 0.0
    %563 = vmatprep.subr.mxu0 0.0
    %564 = vmatpush1.xpose.msra.mxu0 0.0
    %565 = vmatprep.subr.mxu0 0.0
    %566 = vmatpush1.xpose.msra.mxu0 0.0
    %567 = vmatprep.subr.mxu0 0.0
    %568 = vmatpush1.xpose.msra.mxu0 0.0
    %569 = vmatprep.subr.mxu0 0.0
    %570 = vmatpush1.xpose.msra.mxu0 0.0
    %571 = vmatprep.subr.mxu0 0.0
    %572 = vmatpush1.xpose.msra.mxu0 0.0
    %573 = vmatprep.subr.mxu0 0.0
    %574 = vmatpush1.xpose.msra.mxu0 0.0
    %575 = vmatprep.subr.mxu0 0.0
    %576 = vmatpush1.xpose.msra.mxu0 0.0
    %577 = vmatprep.subr.mxu0 0.0
    %578 = vmatpush1.xpose.msra.mxu0 0.0
    %579 = vmatprep.subr.mxu0 0.0
    %580 = vmatpush1.xpose.msra.mxu0 0.0
    %581 = vmatprep.subr.mxu0 0.0
    %582 = vmatpush1.xpose.msra.mxu0 0.0
    %583 = vmatprep.subr.mxu0 0.0
    %584 = vmatpush1.xpose.msra.mxu0 0.0
    %585 = vmatprep.subr.mxu0 0.0
    %586 = vmatpush1.xpose.msra.mxu0 0.0
    %587 = vmatprep.subr.mxu0 0.0
    %588 = vmatpush1.xpose.msra.mxu0 0.0
    %589 = vmatprep.subr.mxu0 0.0
    %590 = vmatpush1.xpose.msra.mxu0 0.0
    %591 = vmatprep.subr.mxu0 0.0
    %592 = vmatpush1.xpose.msra.mxu0 0.0
    %593 = vmatprep.subr.mxu0 0.0
    %594 = vmatpush1.xpose.msra.mxu0 0.0
    %595 = vmatprep.subr.mxu0 0.0
    %596 = vmatpush1.xpose.msra.mxu0 0.0
    %597 = vmatprep.subr.mxu0 0.0
    %598 = vmatpush1.xpose.msra.mxu0 0.0
    %599 = vmatprep.mubr.f32.mxu0 0.0
    %600 = vmatmul.mubr.f32.gmra.mrb[0].mxu0 %v531
    %v601 = vpop.f32.mrb[0].mxu0
    %v602 = vadd.f32 0.0, %v601
    %v603 = vpop.f32.mrb[0].mxu0
    %604 = vdwg.mxu0
    %605 = vrot.lane.b32.xlu0 %v195, 120
    %v606 = vpop.permute.xlu0 %605
    %607 = vrot.lane.b32.xlu0 %v195, 88
    %v608 = vpop.permute.xlu0 %607
    %v609 = vsel %vm201, %v606, 0
    %v611 = vsel %vm201, %v608, 0
    %613 = vmatprep.subr.mxu0 0.0
    %614 = vmatpush1.xpose.msra.mxu0 %v611
    %615 = vmatprep.subr.mxu0 0.0
    %616 = vmatpush1.xpose.msra.mxu0 0.0
    %617 = vmatprep.subr.mxu0 0.0
    %618 = vmatpush1.xpose.msra.mxu0 0.0
    %619 = vmatprep.subr.mxu0 0.0
    %620 = vmatpush1.xpose.msra.mxu0 0.0
    %621 = vmatprep.subr.mxu0 0.0
    %622 = vmatpush1.xpose.msra.mxu0 0.0
    %623 = vmatprep.subr.mxu0 0.0
    %624 = vmatpush1.xpose.msra.mxu0 0.0
    %625 = vmatprep.subr.mxu0 0.0
    %626 = vmatpush1.xpose.msra.mxu0 0.0
    %627 = vmatprep.subr.mxu0 0.0
    %628 = vmatpush1.xpose.msra.mxu0 0.0
    %629 = vmatprep.subr.mxu0 0.0
    %630 = vmatpush1.xpose.msra.mxu0 0.0
    %631 = vmatprep.subr.mxu0 0.0
    %632 = vmatpush1.xpose.msra.mxu0 0.0
    %633 = vmatprep.subr.mxu0 0.0
    %634 = vmatpush1.xpose.msra.mxu0 0.0
    %635 = vmatprep.subr.mxu0 0.0
    %636 = vmatpush1.xpose.msra.mxu0 0.0
    %637 = vmatprep.subr.mxu0 0.0
    %638 = vmatpush1.xpose.msra.mxu0 0.0
    %639 = vmatprep.subr.mxu0 0.0
    %640 = vmatpush1.xpose.msra.mxu0 0.0
    %641 = vmatprep.subr.mxu0 0.0
    %642 = vmatpush1.xpose.msra.mxu0 0.0
    %643 = vmatprep.subr.mxu0 0.0
    %644 = vmatpush1.xpose.msra.mxu0 0.0
    %645 = vmatprep.subr.mxu0 0.0
    %646 = vmatpush1.xpose.msra.mxu0 0.0
    %647 = vmatprep.subr.mxu0 0.0
    %648 = vmatpush1.xpose.msra.mxu0 0.0
    %649 = vmatprep.subr.mxu0 0.0
    %650 = vmatpush1.xpose.msra.mxu0 0.0
    %651 = vmatprep.subr.mxu0 0.0
    %652 = vmatpush1.xpose.msra.mxu0 0.0
    %653 = vmatprep.subr.mxu0 0.0
    %654 = vmatpush1.xpose.msra.mxu0 0.0
    %655 = vmatprep.subr.mxu0 0.0
    %656 = vmatpush1.xpose.msra.mxu0 0.0
    %657 = vmatprep.subr.mxu0 0.0
    %658 = vmatpush1.xpose.msra.mxu0 0.0
    %659 = vmatprep.subr.mxu0 0.0
    %660 = vmatpush1.xpose.msra.mxu0 0.0
    %661 = vmatprep.subr.mxu0 0.0
    %662 = vmatpush1.xpose.msra.mxu0 0.0
    %663 = vmatprep.subr.mxu0 0.0
    %664 = vmatpush1.xpose.msra.mxu0 0.0
    %665 = vmatprep.subr.mxu0 0.0
    %666 = vmatpush1.xpose.msra.mxu0 0.0
    %667 = vmatprep.subr.mxu0 0.0
    %668 = vmatpush1.xpose.msra.mxu0 0.0
    %669 = vmatprep.subr.mxu0 0.0
    %670 = vmatpush1.xpose.msra.mxu0 0.0
    %671 = vmatprep.subr.mxu0 0.0
    %672 = vmatpush1.xpose.msra.mxu0 0.0
    %673 = vmatprep.subr.mxu0 0.0
    %674 = vmatpush1.xpose.msra.mxu0 0.0
    %675 = vmatprep.subr.mxu0 0.0
    %676 = vmatpush1.xpose.msra.mxu0 0.0
    %677 = vmatprep.mubr.f32.mxu0 0.0
    %678 = vmatmul.mubr.f32.gmra.mrb[0].mxu0 %v609
    %v679 = vpop.f32.mrb[0].mxu0
    %v680 = vadd.f32 0.0, %v679
    %v681 = vpop.f32.mrb[0].mxu0
    %682 = vdwg.mxu0
    %v683 = vsel %vm201, %v602, -inf
    %684 = vmax.xlane.f32.xlu0 %v683
    %v685 = vpop.xlane.xlu0 %684
    %v686 = vsel %vm201, %v680, -inf
    %687 = vmax.xlane.f32.xlu0 %v686
    %v688 = vpop.xlane.xlu0 %687
    %v689 = vsub.f32 %v602, %v685
    %v690 = vsub.f32 %v680, %v688
    %v691 = vmul.f32 %v689, 1.442695
    %v692 = vpow.pop %v691
    %v693 = vmul.f32 %v690, 1.442695
    %v694 = vpow.pop %v693
    %v695 = vsel %vm201, %v692, 0.0
    %696 = vadd.xlane.f32.xlu0 %v695
    %v697 = vpop.xlane.xlu0 %696
    %v698 = vsel %vm201, %v694, 0.0
    %699 = vadd.xlane.f32.xlu0 %v698
    %v700 = vpop.xlane.xlu0 %699
    %v701 = vrcp.pop %v697
    %v702 = vrcp.pop %v700
    %v703 = vmul.f32 %v692, %v701
    %v704 = vmul.f32 %v694, %v702
    %705 = vrot.lane.b32.xlu0 %v190, 56
    %v706 = vpop.permute.xlu0 %705
    %v709 = vsel %vm201, %v703, 0
    %711 = vmatprep.subr.mxu0 0.0
    %712 = vmatpush1.msra.mxu0 %v706
    %713 = vmatprep.subr.mxu0 0.0
    %714 = vmatpush1.msra.mxu0 0.0
    %715 = vmatprep.subr.mxu0 0.0
    %716 = vmatpush1.msra.mxu0 0.0
    %717 = vmatprep.subr.mxu0 0.0
    %718 = vmatpush1.msra.mxu0 0.0
    %719 = vmatprep.subr.mxu0 0.0
    %720 = vmatpush1.msra.mxu0 0.0
    %721 = vmatprep.subr.mxu0 0.0
    %722 = vmatpush1.msra.mxu0 0.0
    %723 = vmatprep.subr.mxu0 0.0
    %724 = vmatpush1.msra.mxu0 0.0
    %725 = vmatprep.subr.mxu0 0.0
    %726 = vmatpush1.msra.mxu0 0.0
    %727 = vmatprep.subr.mxu0 0.0
    %728 = vmatpush1.msra.mxu0 0.0
    %729 = vmatprep.subr.mxu0 0.0
    %730 = vmatpush1.msra.mxu0 0.0
    %731 = vmatprep.subr.mxu0 0.0
    %732 = vmatpush1.msra.mxu0 0.0
    %733 = vmatprep.subr.mxu0 0.0
    %734 = vmatpush1.msra.mxu0 0.0
    %735 = vmatprep.subr.mxu0 0.0
    %736 = vmatpush1.msra.mxu0 0.0
    %737 = vmatprep.subr.mxu0 0.0
    %738 = vmatpush1.msra.mxu0 0.0
    %739 = vmatprep.subr.mxu0 0.0
    %740 = vmatpush1.msra.mxu0 0.0
    %741 = vmatprep.subr.mxu0 0.0
    %742 = vmatpush1.msra.mxu0 0.0
    %743 = vmatprep.subr.mxu0 0.0
    %744 = vmatpush1.msra.mxu0 0.0
    %745 = vmatprep.subr.mxu0 0.0
    %746 = vmatpush1.msra.mxu0 0.0
    %747 = vmatprep.subr.mxu0 0.0
    %748 = vmatpush1.msra.mxu0 0.0
    %749 = vmatprep.subr.mxu0 0.0
    %750 = vmatpush1.msra.mxu0 0.0
    %751 = vmatprep.subr.mxu0 0.0
    %752 = vmatpush1.msra.mxu0 0.0
    %753 = vmatprep.subr.mxu0 0.0
    %754 = vmatpush1.msra.mxu0 0.0
    %755 = vmatprep.subr.mxu0 0.0
    %756 = vmatpush1.msra.mxu0 0.0
    %757 = vmatprep.subr.mxu0 0.0
    %758 = vmatpush1.msra.mxu0 0.0
    %759 = vmatprep.subr.mxu0 0.0
    %760 = vmatpush1.msra.mxu0 0.0
    %761 = vmatprep.subr.mxu0 0.0
    %762 = vmatpush1.msra.mxu0 0.0
    %763 = vmatprep.subr.mxu0 0.0
    %764 = vmatpush1.msra.mxu0 0.0
    %765 = vmatprep.subr.mxu0 0.0
    %766 = vmatpush1.msra.mxu0 0.0
    %767 = vmatprep.subr.mxu0 0.0
    %768 = vmatpush1.msra.mxu0 0.0
    %769 = vmatprep.subr.mxu0 0.0
    %770 = vmatpush1.msra.mxu0 0.0
    %771 = vmatprep.subr.mxu0 0.0
    %772 = vmatpush1.msra.mxu0 0.0
    %773 = vmatprep.subr.mxu0 0.0
    %774 = vmatpush1.msra.mxu0 0.0
    %775 = vmatprep.mubr.f32.mxu0 0.0
    %776 = vmatmul.mubr.f32.gmra.mrb[0].mxu0 %v709
    %v777 = vpop.f32.mrb[0].mxu0
    %v778 = vadd.f32 0.0, %v777
    %v779 = vpop.f32.mrb[0].mxu0
    %780 = vdwg.mxu0
    %781 = vrot.lane.b32.xlu0 %v195, 56
    %v782 = vpop.permute.xlu0 %781
    %v785 = vsel %vm201, %v704, 0
    %787 = vmatprep.subr.mxu0 0.0
    %788 = vmatpush1.msra.mxu0 %v782
    %789 = vmatprep.subr.mxu0 0.0
    %790 = vmatpush1.msra.mxu0 0.0
    %791 = vmatprep.subr.mxu0 0.0
    %792 = vmatpush1.msra.mxu0 0.0
    %793 = vmatprep.subr.mxu0 0.0
    %794 = vmatpush1.msra.mxu0 0.0
    %795 = vmatprep.subr.mxu0 0.0
    %796 = vmatpush1.msra.mxu0 0.0
    %797 = vmatprep.subr.mxu0 0.0
    %798 = vmatpush1.msra.mxu0 0.0
    %799 = vmatprep.subr.mxu0 0.0
    %800 = vmatpush1.msra.mxu0 0.0
    %801 = vmatprep.subr.mxu0 0.0
    %802 = vmatpush1.msra.mxu0 0.0
    %803 = vmatprep.subr.mxu0 0.0
    %804 = vmatpush1.msra.mxu0 0.0
    %805 = vmatprep.subr.mxu0 0.0
    %806 = vmatpush1.msra.mxu0 0.0
    %807 = vmatprep.subr.mxu0 0.0
    %808 = vmatpush1.msra.mxu0 0.0
    %809 = vmatprep.subr.mxu0 0.0
    %810 = vmatpush1.msra.mxu0 0.0
    %811 = vmatprep.subr.mxu0 0.0
    %812 = vmatpush1.msra.mxu0 0.0
    %813 = vmatprep.subr.mxu0 0.0
    %814 = vmatpush1.msra.mxu0 0.0
    %815 = vmatprep.subr.mxu0 0.0
    %816 = vmatpush1.msra.mxu0 0.0
    %817 = vmatprep.subr.mxu0 0.0
    %818 = vmatpush1.msra.mxu0 0.0
    %819 = vmatprep.subr.mxu0 0.0
    %820 = vmatpush1.msra.mxu0 0.0
    %821 = vmatprep.subr.mxu0 0.0
    %822 = vmatpush1.msra.mxu0 0.0
    %823 = vmatprep.subr.mxu0 0.0
    %824 = vmatpush1.msra.mxu0 0.0
    %825 = vmatprep.subr.mxu0 0.0
    %826 = vmatpush1.msra.mxu0 0.0
    %827 = vmatprep.subr.mxu0 0.0
    %828 = vmatpush1.msra.mxu0 0.0
    %829 = vmatprep.subr.mxu0 0.0
    %830 = vmatpush1.msra.mxu0 0.0
    %831 = vmatprep.subr.mxu0 0.0
    %832 = vmatpush1.msra.mxu0 0.0
    %833 = vmatprep.subr.mxu0 0.0
    %834 = vmatpush1.msra.mxu0 0.0
    %835 = vmatprep.subr.mxu0 0.0
    %836 = vmatpush1.msra.mxu0 0.0
    %837 = vmatprep.subr.mxu0 0.0
    %838 = vmatpush1.msra.mxu0 0.0
    %839 = vmatprep.subr.mxu0 0.0
    %840 = vmatpush1.msra.mxu0 0.0
    %841 = vmatprep.subr.mxu0 0.0
    %842 = vmatpush1.msra.mxu0 0.0
    %843 = vmatprep.subr.mxu0 0.0
    %844 = vmatpush1.msra.mxu0 0.0
    %845 = vmatprep.subr.mxu0 0.0
    %846 = vmatpush1.msra.mxu0 0.0
    %847 = vmatprep.subr.mxu0 0.0
    %848 = vmatpush1.msra.mxu0 0.0
    %849 = vmatprep.subr.mxu0 0.0
    %850 = vmatpush1.msra.mxu0 0.0
    %851 = vmatprep.mubr.f32.mxu0 0.0
    %852 = vmatmul.mubr.f32.gmra.mrb[0].mxu0 %v785
    %v853 = vpop.f32.mrb[0].mxu0
    %v854 = vadd.f32 0.0, %v853
    %v855 = vpop.f32.mrb[0].mxu0
    %856 = vdwg.mxu0
    %v858 = vsel %vm201, %v778, 0
    %v861 = vsel %vm201, %v854, 0
    %863 = vmatprep.subr.mxu0 0.0
    %864 = vmatpush1.msra.mxu0 %v58
    %865 = vmatprep.subr.mxu0 0.0
    %866 = vmatpush1.msra.mxu0 0.0
    %867 = vmatprep.subr.mxu0 0.0
    %868 = vmatpush1.msra.mxu0 0.0
    %869 = vmatprep.subr.mxu0 0.0
    %870 = vmatpush1.msra.mxu0 0.0
    %871 = vmatprep.subr.mxu0 0.0
    %872 = vmatpush1.msra.mxu0 0.0
    %873 = vmatprep.subr.mxu0 0.0
    %874 = vmatpush1.msra.mxu0 0.0
    %875 = vmatprep.subr.mxu0 0.0
    %876 = vmatpush1.msra.mxu0 0.0
    %877 = vmatprep.subr.mxu0 0.0
    %878 = vmatpush1.msra.mxu0 0.0
    %879 = vmatprep.subr.mxu0 0.0
    %880 = vmatpush1.msra.mxu0 0.0
    %881 = vmatprep.subr.mxu0 0.0
    %882 = vmatpush1.msra.mxu0 0.0
    %883 = vmatprep.subr.mxu0 0.0
    %884 = vmatpush1.msra.mxu0 0.0
    %885 = vmatprep.subr.mxu0 0.0
    %886 = vmatpush1.msra.mxu0 0.0
    %887 = vmatprep.subr.mxu0 0.0
    %888 = vmatpush1.msra.mxu0 0.0
    %889 = vmatprep.subr.mxu0 0.0
    %890 = vmatpush1.msra.mxu0 0.0
    %891 = vmatprep.subr.mxu0 0.0
    %892 = vmatpush1.msra.mxu0 0.0
    %893 = vmatprep.subr.mxu0 0.0
    %894 = vmatpush1.msra.mxu0 0.0
    %895 = vmatprep.subr.mxu0 0.0
    %896 = vmatpush1.msra.mxu0 0.0
    %897 = vmatprep.subr.mxu0 0.0
    %898 = vmatpush1.msra.mxu0 0.0
    %899 = vmatprep.subr.mxu0 0.0
    %900 = vmatpush1.msra.mxu0 0.0
    %901 = vmatprep.subr.mxu0 0.0
    %902 = vmatpush1.msra.mxu0 0.0
    %903 = vmatprep.subr.mxu0 0.0
    %904 = vmatpush1.msra.mxu0 0.0
    %905 = vmatprep.subr.mxu0 0.0
    %906 = vmatpush1.msra.mxu0 0.0
    %907 = vmatprep.subr.mxu0 0.0
    %908 = vmatpush1.msra.mxu0 0.0
    %909 = vmatprep.subr.mxu0 0.0
    %910 = vmatpush1.msra.mxu0 0.0
    %911 = vmatprep.subr.mxu0 0.0
    %912 = vmatpush1.msra.mxu0 0.0
    %913 = vmatprep.subr.mxu0 0.0
    %914 = vmatpush1.msra.mxu0 0.0
    %915 = vmatprep.subr.mxu0 0.0
    %916 = vmatpush1.msra.mxu0 0.0
    %917 = vmatprep.subr.mxu0 0.0
    %918 = vmatpush1.msra.mxu0 0.0
    %919 = vmatprep.subr.mxu0 0.0
    %920 = vmatpush1.msra.mxu0 0.0
    %921 = vmatprep.subr.mxu0 0.0
    %922 = vmatpush1.msra.mxu0 0.0
    %923 = vmatprep.subr.mxu0 0.0
    %924 = vmatpush1.msra.mxu0 0.0
    %925 = vmatprep.subr.mxu0 0.0
    %926 = vmatpush1.msra.mxu0 0.0
    %927 = vmatprep.mubr.f32.mxu0 0.0
    %928 = vmatmul.mubr.f32.gmra.mrb[0].mxu0 %v858
    %v929 = vpop.f32.mrb[0].mxu0
    %v930 = vadd.f32 0.0, %v929
    %v931 = vpop.f32.mrb[0].mxu0
    %932 = vmatprep.mubr.f32.mxu0 0.0
    %933 = vmatmul.mubr.f32.gmra.mrb[0].mxu0 %v861
    %v934 = vpop.f32.mrb[0].mxu0
    %v935 = vadd.f32 0.0, %v934
    %v936 = vpop.f32.mrb[0].mxu0
    %937 = vdwg.mxu0
    %v939 = vsel %vm201, %v448, 0
    %v942 = vsel %vm201, %v524, 0
    %944 = vmatprep.subr.mxu0 0.0
    %945 = vmatpush1.msra.mxu0 %v57
    %946 = vmatprep.subr.mxu0 0.0
    %947 = vmatpush1.msra.mxu0 0.0
    %948 = vmatprep.subr.mxu0 0.0
    %949 = vmatpush1.msra.mxu0 0.0
    %950 = vmatprep.subr.mxu0 0.0
    %951 = vmatpush1.msra.mxu0 0.0
    %952 = vmatprep.subr.mxu0 0.0
    %953 = vmatpush1.msra.mxu0 0.0
    %954 = vmatprep.subr.mxu0 0.0
    %955 = vmatpush1.msra.mxu0 0.0
    %956 = vmatprep.subr.mxu0 0.0
    %957 = vmatpush1.msra.mxu0 0.0
    %958 = vmatprep.subr.mxu0 0.0
    %959 = vmatpush1.msra.mxu0 0.0
    %960 = vmatprep.subr.mxu0 0.0
    %961 = vmatpush1.msra.mxu0 0.0
    %962 = vmatprep.subr.mxu0 0.0
    %963 = vmatpush1.msra.mxu0 0.0
    %964 = vmatprep.subr.mxu0 0.0
    %965 = vmatpush1.msra.mxu0 0.0
    %966 = vmatprep.subr.mxu0 0.0
    %967 = vmatpush1.msra.mxu0 0.0
    %968 = vmatprep.subr.mxu0 0.0
    %969 = vmatpush1.msra.mxu0 0.0
    %970 = vmatprep.subr.mxu0 0.0
    %971 = vmatpush1.msra.mxu0 0.0
    %972 = vmatprep.subr.mxu0 0.0
    %973 = vmatpush1.msra.mxu0 0.0
    %974 = vmatprep.subr.mxu0 0.0
    %975 = vmatpush1.msra.mxu0 0.0
    %976 = vmatprep.subr.mxu0 0.0
    %977 = vmatpush1.msra.mxu0 0.0
    %978 = vmatprep.subr.mxu0 0.0
    %979 = vmatpush1.msra.mxu0 0.0
    %980 = vmatprep.subr.mxu0 0.0
    %981 = vmatpush1.msra.mxu0 0.0
    %982 = vmatprep.subr.mxu0 0.0
    %983 = vmatpush1.msra.mxu0 0.0
    %984 = vmatprep.subr.mxu0 0.0
    %985 = vmatpush1.msra.mxu0 0.0
    %986 = vmatprep.subr.mxu0 0.0
    %987 = vmatpush1.msra.mxu0 0.0
    %988 = vmatprep.subr.mxu0 0.0
    %989 = vmatpush1.msra.mxu0 0.0
    %990 = vmatprep.subr.mxu0 0.0
    %991 = vmatpush1.msra.mxu0 0.0
    %992 = vmatprep.subr.mxu0 0.0
    %993 = vmatpush1.msra.mxu0 0.0
    %994 = vmatprep.subr.mxu0 0.0
    %995 = vmatpush1.msra.mxu0 0.0
    %996 = vmatprep.subr.mxu0 0.0
    %997 = vmatpush1.msra.mxu0 0.0
    %998 = vmatprep.subr.mxu0 0.0
    %999 = vmatpush1.msra.mxu0 0.0
    %1000 = vmatprep.subr.mxu0 0.0
    %1001 = vmatpush1.msra.mxu0 0.0
    %1002 = vmatprep.subr.mxu0 0.0
    %1003 = vmatpush1.msra.mxu0 0.0
    %1004 = vmatprep.subr.mxu0 0.0
    %1005 = vmatpush1.msra.mxu0 0.0
    %1006 = vmatprep.subr.mxu0 0.0
    %1007 = vmatpush1.msra.mxu0 0.0
    %1008 = vmatprep.mubr.f32.mxu0 0.0
    %1009 = vmatmul.mubr.f32.gmra.mrb[0].mxu0 %v939
    %v1010 = vpop.f32.mrb[0].mxu0
    %v1011 = vadd.f32 %v930, %v1010
    %v1012 = vpop.f32.mrb[0].mxu0
    %1013 = vmatprep.mubr.f32.mxu0 0.0
    %1014 = vmatmul.mubr.f32.gmra.mrb[0].mxu0 %v942
    %v1015 = vpop.f32.mrb[0].mxu0
    %v1016 = vadd.f32 %v935, %v1015
    %v1017 = vpop.f32.mrb[0].mxu0
    %1018 = vdwg.mxu0
    %1019 = vrot.lane.b32.xlu0 %v190, 112
    %v1020 = vpop.permute.xlu0 %1019
    %1021 = vrot.lane.b32.xlu0 %v190, 80
    %v1022 = vpop.permute.xlu0 %1021
    %v1023 = vsel %vm201, %v1020, 0
    %v1025 = vsel %vm201, %v1022, 0
    %1027 = vmatprep.subr.mxu0 0.0
    %1028 = vmatpush1.xpose.msra.mxu0 %v1025
    %1029 = vmatprep.subr.mxu0 0.0
    %1030 = vmatpush1.xpose.msra.mxu0 0.0
    %1031 = vmatprep.subr.mxu0 0.0
    %1032 = vmatpush1.xpose.msra.mxu0 0.0
    %1033 = vmatprep.subr.mxu0 0.0
    %1034 = vmatpush1.xpose.msra.mxu0 0.0
    %1035 = vmatprep.subr.mxu0 0.0
    %1036 = vmatpush1.xpose.msra.mxu0 0.0
    %1037 = vmatprep.subr.mxu0 0.0
    %1038 = vmatpush1.xpose.msra.mxu0 0.0
    %1039 = vmatprep.subr.mxu0 0.0
    %1040 = vmatpush1.xpose.msra.mxu0 0.0
    %1041 = vmatprep.subr.mxu0 0.0
    %1042 = vmatpush1.xpose.msra.mxu0 0.0
    %1043 = vmatprep.subr.mxu0 0.0
    %1044 = vmatpush1.xpose.msra.mxu0 0.0
    %1045 = vmatprep.subr.mxu0 0.0
    %1046 = vmatpush1.xpose.msra.mxu0 0.0
    %1047 = vmatprep.subr.mxu0 0.0
    %1048 = vmatpush1.xpose.msra.mxu0 0.0
    %1049 = vmatprep.subr.mxu0 0.0
    %1050 = vmatpush1.xpose.msra.mxu0 0.0
    %1051 = vmatprep.subr.mxu0 0.0
    %1052 = vmatpush1.xpose.msra.mxu0 0.0
    %1053 = vmatprep.subr.mxu0 0.0
    %1054 = vmatpush1.xpose.msra.mxu0 0.0
    %1055 = vmatprep.subr.mxu0 0.0
    %1056 = vmatpush1.xpose.msra.mxu0 0.0
    %1057 = vmatprep.subr.mxu0 0.0
    %1058 = vmatpush1.xpose.msra.mxu0 0.0
    %1059 = vmatprep.subr.mxu0 0.0
    %1060 = vmatpush1.xpose.msra.mxu0 0.0
    %1061 = vmatprep.subr.mxu0 0.0
    %1062 = vmatpush1.xpose.msra.mxu0 0.0
    %1063 = vmatprep.subr.mxu0 0.0
    %1064 = vmatpush1.xpose.msra.mxu0 0.0
    %1065 = vmatprep.subr.mxu0 0.0
    %1066 = vmatpush1.xpose.msra.mxu0 0.0
    %1067 = vmatprep.subr.mxu0 0.0
    %1068 = vmatpush1.xpose.msra.mxu0 0.0
    %1069 = vmatprep.subr.mxu0 0.0
    %1070 = vmatpush1.xpose.msra.mxu0 0.0
    %1071 = vmatprep.subr.mxu0 0.0
    %1072 = vmatpush1.xpose.msra.mxu0 0.0
    %1073 = vmatprep.subr.mxu0 0.0
    %1074 = vmatpush1.xpose.msra.mxu0 0.0
    %1075 = vmatprep.subr.mxu0 0.0
    %1076 = vmatpush1.xpose.msra.mxu0 0.0
    %1077 = vmatprep.subr.mxu0 0.0
    %1078 = vmatpush1.xpose.msra.mxu0 0.0
    %1079 = vmatprep.subr.mxu0 0.0
    %1080 = vmatpush1.xpose.msra.mxu0 0.0
    %1081 = vmatprep.subr.mxu0 0.0
    %1082 = vmatpush1.xpose.msra.mxu0 0.0
    %1083 = vmatprep.subr.mxu0 0.0
    %1084 = vmatpush1.xpose.msra.mxu0 0.0
    %1085 = vmatprep.subr.mxu0 0.0
    %1086 = vmatpush1.xpose.msra.mxu0 0.0
    %1087 = vmatprep.subr.mxu0 0.0
    %1088 = vmatpush1.xpose.msra.mxu0 0.0
    %1089 = vmatprep.subr.mxu0 0.0
    %1090 = vmatpush1.xpose.msra.mxu0 0.0
    %1091 = vmatprep.mubr.f32.mxu0 0.0
    %1092 = vmatmul.mubr.f32.gmra.mrb[0].mxu0 %v1023
    %v1093 = vpop.f32.mrb[0].mxu0
    %v1094 = vadd.f32 0.0, %v1093
    %v1095 = vpop.f32.mrb[0].mxu0
    %1096 = vdwg.mxu0
    %1097 = vrot.lane.b32.xlu0 %v195, 112
    %v1098 = vpop.permute.xlu0 %1097
    %1099 = vrot.lane.b32.xlu0 %v195, 80
    %v1100 = vpop.permute.xlu0 %1099
    %v1101 = vsel %vm201, %v1098, 0
    %v1103 = vsel %vm201, %v1100, 0
    %1105 = vmatprep.subr.mxu0 0.0
    %1106 = vmatpush1.xpose.msra.mxu0 %v1103
    %1107 = vmatprep.subr.mxu0 0.0
    %1108 = vmatpush1.xpose.msra.mxu0 0.0
    %1109 = vmatprep.subr.mxu0 0.0
    %1110 = vmatpush1.xpose.msra.mxu0 0.0
    %1111 = vmatprep.subr.mxu0 0.0
    %1112 = vmatpush1.xpose.msra.mxu0 0.0
    %1113 = vmatprep.subr.mxu0 0.0
    %1114 = vmatpush1.xpose.msra.mxu0 0.0
    %1115 = vmatprep.subr.mxu0 0.0
    %1116 = vmatpush1.xpose.msra.mxu0 0.0
    %1117 = vmatprep.subr.mxu0 0.0
    %1118 = vmatpush1.xpose.msra.mxu0 0.0
    %1119 = vmatprep.subr.mxu0 0.0
    %1120 = vmatpush1.xpose.msra.mxu0 0.0
    %1121 = vmatprep.subr.mxu0 0.0
    %1122 = vmatpush1.xpose.msra.mxu0 0.0
    %1123 = vmatprep.subr.mxu0 0.0
    %1124 = vmatpush1.xpose.msra.mxu0 0.0
    %1125 = vmatprep.subr.mxu0 0.0
    %1126 = vmatpush1.xpose.msra.mxu0 0.0
    %1127 = vmatprep.subr.mxu0 0.0
    %1128 = vmatpush1.xpose.msra.mxu0 0.0
    %1129 = vmatprep.subr.mxu0 0.0
    %1130 = vmatpush1.xpose.msra.mxu0 0.0
    %1131 = vmatprep.subr.mxu0 0.0
    %1132 = vmatpush1.xpose.msra.mxu0 0.0
    %1133 = vmatprep.subr.mxu0 0.0
    %1134 = vmatpush1.xpose.msra.mxu0 0.0
    %1135 = vmatprep.subr.mxu0 0.0
    %1136 = vmatpush1.xpose.msra.mxu0 0.0
    %1137 = vmatprep.subr.mxu0 0.0
    %1138 = vmatpush1.xpose.msra.mxu0 0.0
    %1139 = vmatprep.subr.mxu0 0.0
    %1140 = vmatpush1.xpose.msra.mxu0 0.0
    %1141 = vmatprep.subr.mxu0 0.0
    %1142 = vmatpush1.xpose.msra.mxu0 0.0
    %1143 = vmatprep.subr.mxu0 0.0
    %1144 = vmatpush1.xpose.msra.mxu0 0.0
    %1145 = vmatprep.subr.mxu0 0.0
    %1146 = vmatpush1.xpose.msra.mxu0 0.0
    %1147 = vmatprep.subr.mxu0 0.0
    %1148 = vmatpush1.xpose.msra.mxu0 0.0
    %1149 = vmatprep.subr.mxu0 0.0
    %1150 = vmatpush1.xpose.msra.mxu0 0.0
    %1151 = vmatprep.subr.mxu0 0.0
    %1152 = vmatpush1.xpose.msra.mxu0 0.0
    %1153 = vmatprep.subr.mxu0 0.0
    %1154 = vmatpush1.xpose.msra.mxu0 0.0
    %1155 = vmatprep.subr.mxu0 0.0
    %1156 = vmatpush1.xpose.msra.mxu0 0.0
    %1157 = vmatprep.subr.mxu0 0.0
    %1158 = vmatpush1.xpose.msra.mxu0 0.0
    %1159 = vmatprep.subr.mxu0 0.0
    %1160 = vmatpush1.xpose.msra.mxu0 0.0
    %1161 = vmatprep.subr.mxu0 0.0
    %1162 = vmatpush1.xpose.msra.mxu0 0.0
    %1163 = vmatprep.subr.mxu0 0.0
    %1164 = vmatpush1.xpose.msra.mxu0 0.0
    %1165 = vmatprep.subr.mxu0 0.0
    %1166 = vmatpush1.xpose.msra.mxu0 0.0
    %1167 = vmatprep.subr.mxu0 0.0
    %1168 = vmatpush1.xpose.msra.mxu0 0.0
    %1169 = vmatprep.mubr.f32.mxu0 0.0
    %1170 = vmatmul.mubr.f32.gmra.mrb[0].mxu0 %v1101
    %v1171 = vpop.f32.mrb[0].mxu0
    %v1172 = vadd.f32 0.0, %v1171
    %v1173 = vpop.f32.mrb[0].mxu0
    %1174 = vdwg.mxu0
    %v1175 = vsel %vm201, %v1094, -inf
    %1176 = vmax.xlane.f32.xlu0 %v1175
    %v1177 = vpop.xlane.xlu0 %1176
    %v1178 = vsel %vm201, %v1172, -inf
    %1179 = vmax.xlane.f32.xlu0 %v1178
    %v1180 = vpop.xlane.xlu0 %1179
    %v1181 = vsub.f32 %v1094, %v1177
    %v1182 = vsub.f32 %v1172, %v1180
    %v1183 = vmul.f32 %v1181, 1.442695
    %v1184 = vpow.pop %v1183
    %v1185 = vmul.f32 %v1182, 1.442695
    %v1186 = vpow.pop %v1185
    %v1187 = vsel %vm201, %v1184, 0.0
    %1188 = vadd.xlane.f32.xlu0 %v1187
    %v1189 = vpop.xlane.xlu0 %1188
    %v1190 = vsel %vm201, %v1186, 0.0
    %1191 = vadd.xlane.f32.xlu0 %v1190
    %v1192 = vpop.xlane.xlu0 %1191
    %v1193 = vrcp.pop %v1189
    %v1194 = vrcp.pop %v1192
    %v1195 = vmul.f32 %v1184, %v1193
    %v1196 = vmul.f32 %v1186, %v1194
    %1197 = vrot.lane.b32.xlu0 %v190, 48
    %v1198 = vpop.permute.xlu0 %1197
    %v1201 = vsel %vm201, %v1195, 0
    %1203 = vmatprep.subr.mxu0 0.0
    %1204 = vmatpush1.msra.mxu0 %v1198
    %1205 = vmatprep.subr.mxu0 0.0
    %1206 = vmatpush1.msra.mxu0 0.0
    %1207 = vmatprep.subr.mxu0 0.0
    %1208 = vmatpush1.msra.mxu0 0.0
    %1209 = vmatprep.subr.mxu0 0.0
    %1210 = vmatpush1.msra.mxu0 0.0
    %1211 = vmatprep.subr.mxu0 0.0
    %1212 = vmatpush1.msra.mxu0 0.0
    %1213 = vmatprep.subr.mxu0 0.0
    %1214 = vmatpush1.msra.mxu0 0.0
    %1215 = vmatprep.subr.mxu0 0.0
    %1216 = vmatpush1.msra.mxu0 0.0
    %1217 = vmatprep.subr.mxu0 0.0
    %1218 = vmatpush1.msra.mxu0 0.0
    %1219 = vmatprep.subr.mxu0 0.0
    %1220 = vmatpush1.msra.mxu0 0.0
    %1221 = vmatprep.subr.mxu0 0.0
    %1222 = vmatpush1.msra.mxu0 0.0
    %1223 = vmatprep.subr.mxu0 0.0
    %1224 = vmatpush1.msra.mxu0 0.0
    %1225 = vmatprep.subr.mxu0 0.0
    %1226 = vmatpush1.msra.mxu0 0.0
    %1227 = vmatprep.subr.mxu0 0.0
    %1228 = vmatpush1.msra.mxu0 0.0
    %1229 = vmatprep.subr.mxu0 0.0
    %1230 = vmatpush1.msra.mxu0 0.0
    %1231 = vmatprep.subr.mxu0 0.0
    %1232 = vmatpush1.msra.mxu0 0.0
    %1233 = vmatprep.subr.mxu0 0.0
    %1234 = vmatpush1.msra.mxu0 0.0
    %1235 = vmatprep.subr.mxu0 0.0
    %1236 = vmatpush1.msra.mxu0 0.0
    %1237 = vmatprep.subr.mxu0 0.0
    %1238 = vmatpush1.msra.mxu0 0.0
    %1239 = vmatprep.subr.mxu0 0.0
    %1240 = vmatpush1.msra.mxu0 0.0
    %1241 = vmatprep.subr.mxu0 0.0
    %1242 = vmatpush1.msra.mxu0 0.0
    %1243 = vmatprep.subr.mxu0 0.0
    %1244 = vmatpush1.msra.mxu0 0.0
    %1245 = vmatprep.subr.mxu0 0.0
    %1246 = vmatpush1.msra.mxu0 0.0
    %1247 = vmatprep.subr.mxu0 0.0
    %1248 = vmatpush1.msra.mxu0 0.0
    %1249 = vmatprep.subr.mxu0 0.0
    %1250 = vmatpush1.msra.mxu0 0.0
    %1251 = vmatprep.subr.mxu0 0.0
    %1252 = vmatpush1.msra.mxu0 0.0
    %1253 = vmatprep.subr.mxu0 0.0
    %1254 = vmatpush1.msra.mxu0 0.0
    %1255 = vmatprep.subr.mxu0 0.0
    %1256 = vmatpush1.msra.mxu0 0.0
    %1257 = vmatprep.subr.mxu0 0.0
    %1258 = vmatpush1.msra.mxu0 0.0
    %1259 = vmatprep.subr.mxu0 0.0
    %1260 = vmatpush1.msra.mxu0 0.0
    %1261 = vmatprep.subr.mxu0 0.0
    %1262 = vmatpush1.msra.mxu0 0.0
    %1263 = vmatprep.subr.mxu0 0.0
    %1264 = vmatpush1.msra.mxu0 0.0
    %1265 = vmatprep.subr.mxu0 0.0
    %1266 = vmatpush1.msra.mxu0 0.0
    %1267 = vmatprep.mubr.f32.mxu0 0.0
    %1268 = vmatmul.mubr.f32.gmra.mrb[0].mxu0 %v1201
    %v1269 = vpop.f32.mrb[0].mxu0
    %v1270 = vadd.f32 0.0, %v1269
    %v1271 = vpop.f32.mrb[0].mxu0
    %1272 = vdwg.mxu0
    %1273 = vrot.lane.b32.xlu0 %v195, 48
    %v1274 = vpop.permute.xlu0 %1273
    %v1277 = vsel %vm201, %v1196, 0
    %1279 = vmatprep.subr.mxu0 0.0
    %1280 = vmatpush1.msra.mxu0 %v1274
    %1281 = vmatprep.subr.mxu0 0.0
    %1282 = vmatpush1.msra.mxu0 0.0
    %1283 = vmatprep.subr.mxu0 0.0
    %1284 = vmatpush1.msra.mxu0 0.0
    %1285 = vmatprep.subr.mxu0 0.0
    %1286 = vmatpush1.msra.mxu0 0.0
    %1287 = vmatprep.subr.mxu0 0.0
    %1288 = vmatpush1.msra.mxu0 0.0
    %1289 = vmatprep.subr.mxu0 0.0
    %1290 = vmatpush1.msra.mxu0 0.0
    %1291 = vmatprep.subr.mxu0 0.0
    %1292 = vmatpush1.msra.mxu0 0.0
    %1293 = vmatprep.subr.mxu0 0.0
    %1294 = vmatpush1.msra.mxu0 0.0
    %1295 = vmatprep.subr.mxu0 0.0
    %1296 = vmatpush1.msra.mxu0 0.0
    %1297 = vmatprep.subr.mxu0 0.0
    %1298 = vmatpush1.msra.mxu0 0.0
    %1299 = vmatprep.subr.mxu0 0.0
    %1300 = vmatpush1.msra.mxu0 0.0
    %1301 = vmatprep.subr.mxu0 0.0
    %1302 = vmatpush1.msra.mxu0 0.0
    %1303 = vmatprep.subr.mxu0 0.0
    %1304 = vmatpush1.msra.mxu0 0.0
    %1305 = vmatprep.subr.mxu0 0.0
    %1306 = vmatpush1.msra.mxu0 0.0
    %1307 = vmatprep.subr.mxu0 0.0
    %1308 = vmatpush1.msra.mxu0 0.0
    %1309 = vmatprep.subr.mxu0 0.0
    %1310 = vmatpush1.msra.mxu0 0.0
    %1311 = vmatprep.subr.mxu0 0.0
    %1312 = vmatpush1.msra.mxu0 0.0
    %1313 = vmatprep.subr.mxu0 0.0
    %1314 = vmatpush1.msra.mxu0 0.0
    %1315 = vmatprep.subr.mxu0 0.0
    %1316 = vmatpush1.msra.mxu0 0.0
    %1317 = vmatprep.subr.mxu0 0.0
    %1318 = vmatpush1.msra.mxu0 0.0
    %1319 = vmatprep.subr.mxu0 0.0
    %1320 = vmatpush1.msra.mxu0 0.0
    %1321 = vmatprep.subr.mxu0 0.0
    %1322 = vmatpush1.msra.mxu0 0.0
    %1323 = vmatprep.subr.mxu0 0.0
    %1324 = vmatpush1.msra.mxu0 0.0
    %1325 = vmatprep.subr.mxu0 0.0
    %1326 = vmatpush1.msra.mxu0 0.0
    %1327 = vmatprep.subr.mxu0 0.0
    %1328 = vmatpush1.msra.mxu0 0.0
    %1329 = vmatprep.subr.mxu0 0.0
    %1330 = vmatpush1.msra.mxu0 0.0
    %1331 = vmatprep.subr.mxu0 0.0
    %1332 = vmatpush1.msra.mxu0 0.0
    %1333 = vmatprep.subr.mxu0 0.0
    %1334 = vmatpush1.msra.mxu0 0.0
    %1335 = vmatprep.subr.mxu0 0.0
    %1336 = vmatpush1.msra.mxu0 0.0
    %1337 = vmatprep.subr.mxu0 0.0
    %1338 = vmatpush1.msra.mxu0 0.0
    %1339 = vmatprep.subr.mxu0 0.0
    %1340 = vmatpush1.msra.mxu0 0.0
    %1341 = vmatprep.subr.mxu0 0.0
    %1342 = vmatpush1.msra.mxu0 0.0
    %1343 = vmatprep.mubr.f32.mxu0 0.0
    %1344 = vmatmul.mubr.f32.gmra.mrb[0].mxu0 %v1277
    %v1345 = vpop.f32.mrb[0].mxu0
    %v1346 = vadd.f32 0.0, %v1345
    %v1347 = vpop.f32.mrb[0].mxu0
    %1348 = vdwg.mxu0
    %v1350 = vsel %vm201, %v1270, 0
    %v1353 = vsel %vm201, %v1346, 0
    %1355 = vmatprep.subr.mxu0 0.0
    %1356 = vmatpush1.msra.mxu0 %v59
    %1357 = vmatprep.subr.mxu0 0.0
    %1358 = vmatpush1.msra.mxu0 0.0
    %1359 = vmatprep.subr.mxu0 0.0
    %1360 = vmatpush1.msra.mxu0 0.0
    %1361 = vmatprep.subr.mxu0 0.0
    %1362 = vmatpush1.msra.mxu0 0.0
    %1363 = vmatprep.subr.mxu0 0.0
    %1364 = vmatpush1.msra.mxu0 0.0
    %1365 = vmatprep.subr.mxu0 0.0
    %1366 = vmatpush1.msra.mxu0 0.0
    %1367 = vmatprep.subr.mxu0 0.0
    %1368 = vmatpush1.msra.mxu0 0.0
    %1369 = vmatprep.subr.mxu0 0.0
    %1370 = vmatpush1.msra.mxu0 0.0
    %1371 = vmatprep.subr.mxu0 0.0
    %1372 = vmatpush1.msra.mxu0 0.0
    %1373 = vmatprep.subr.mxu0 0.0
    %1374 = vmatpush1.msra.mxu0 0.0
    %1375 = vmatprep.subr.mxu0 0.0
    %1376 = vmatpush1.msra.mxu0 0.0
    %1377 = vmatprep.subr.mxu0 0.0
    %1378 = vmatpush1.msra.mxu0 0.0
    %1379 = vmatprep.subr.mxu0 0.0
    %1380 = vmatpush1.msra.mxu0 0.0
    %1381 = vmatprep.subr.mxu0 0.0
    %1382 = vmatpush1.msra.mxu0 0.0
    %1383 = vmatprep.subr.mxu0 0.0
    %1384 = vmatpush1.msra.mxu0 0.0
    %1385 = vmatprep.subr.mxu0 0.0
    %1386 = vmatpush1.msra.mxu0 0.0
    %1387 = vmatprep.subr.mxu0 0.0
    %1388 = vmatpush1.msra.mxu0 0.0
    %1389 = vmatprep.subr.mxu0 0.0
    %1390 = vmatpush1.msra.mxu0 0.0
    %1391 = vmatprep.subr.mxu0 0.0
    %1392 = vmatpush1.msra.mxu0 0.0
    %1393 = vmatprep.subr.mxu0 0.0
    %1394 = vmatpush1.msra.mxu0 0.0
    %1395 = vmatprep.subr.mxu0 0.0
    %1396 = vmatpush1.msra.mxu0 0.0
    %1397 = vmatprep.subr.mxu0 0.0
    %1398 = vmatpush1.msra.mxu0 0.0
    %1399 = vmatprep.subr.mxu0 0.0
    %1400 = vmatpush1.msra.mxu0 0.0
    %1401 = vmatprep.subr.mxu0 0.0
    %1402 = vmatpush1.msra.mxu0 0.0
    %1403 = vmatprep.subr.mxu0 0.0
    %1404 = vmatpush1.msra.mxu0 0.0
    %1405 = vmatprep.subr.mxu0 0.0
    %1406 = vmatpush1.msra.mxu0 0.0
    %1407 = vmatprep.subr.mxu0 0.0
    %1408 = vmatpush1.msra.mxu0 0.0
    %1409 = vmatprep.subr.mxu0 0.0
    %1410 = vmatpush1.msra.mxu0 0.0
    %1411 = vmatprep.subr.mxu0 0.0
    %1412 = vmatpush1.msra.mxu0 0.0
    %1413 = vmatprep.subr.mxu0 0.0
    %1414 = vmatpush1.msra.mxu0 0.0
    %1415 = vmatprep.subr.mxu0 0.0
    %1416 = vmatpush1.msra.mxu0 0.0
    %1417 = vmatprep.subr.mxu0 0.0
    %1418 = vmatpush1.msra.mxu0 0.0
    %1419 = vmatprep.mubr.f32.mxu0 0.0
    %1420 = vmatmul.mubr.f32.gmra.mrb[0].mxu0 %v1350
    %v1421 = vpop.f32.mrb[0].mxu0
    %v1422 = vadd.f32 0.0, %v1421
    %v1423 = vpop.f32.mrb[0].mxu0
    %1424 = vmatprep.mubr.f32.mxu0 0.0
    %1425 = vmatmul.mubr.f32.gmra.mrb[0].mxu0 %v1353
    %v1426 = vpop.f32.mrb[0].mxu0
    %v1427 = vadd.f32 0.0, %v1426
    %v1428 = vpop.f32.mrb[0].mxu0
    %1429 = vdwg.mxu0
    %v1430 = vadd.f32 %v1011, %v1422
    %v1431 = vadd.f32 %v1016, %v1427
    %1432 = vrot.lane.b32.xlu0 %v190, 104
    %v1433 = vpop.permute.xlu0 %1432
    %1434 = vrot.lane.b32.xlu0 %v190, 72
    %v1435 = vpop.permute.xlu0 %1434
    %v1436 = vsel %vm201, %v1433, 0
    %v1438 = vsel %vm201, %v1435, 0
    %1440 = vmatprep.subr.mxu0 0.0
    %1441 = vmatpush1.xpose.msra.mxu0 %v1438
    %1442 = vmatprep.subr.mxu0 0.0
    %1443 = vmatpush1.xpose.msra.mxu0 0.0
    %1444 = vmatprep.subr.mxu0 0.0
    %1445 = vmatpush1.xpose.msra.mxu0 0.0
    %1446 = vmatprep.subr.mxu0 0.0
    %1447 = vmatpush1.xpose.msra.mxu0 0.0
    %1448 = vmatprep.subr.mxu0 0.0
    %1449 = vmatpush1.xpose.msra.mxu0 0.0
    %1450 = vmatprep.subr.mxu0 0.0
    %1451 = vmatpush1.xpose.msra.mxu0 0.0
    %1452 = vmatprep.subr.mxu0 0.0
    %1453 = vmatpush1.xpose.msra.mxu0 0.0
    %1454 = vmatprep.subr.mxu0 0.0
    %1455 = vmatpush1.xpose.msra.mxu0 0.0
    %1456 = vmatprep.subr.mxu0 0.0
    %1457 = vmatpush1.xpose.msra.mxu0 0.0
    %1458 = vmatprep.subr.mxu0 0.0
    %1459 = vmatpush1.xpose.msra.mxu0 0.0
    %1460 = vmatprep.subr.mxu0 0.0
    %1461 = vmatpush1.xpose.msra.mxu0 0.0
    %1462 = vmatprep.subr.mxu0 0.0
    %1463 = vmatpush1.xpose.msra.mxu0 0.0
    %1464 = vmatprep.subr.mxu0 0.0
    %1465 = vmatpush1.xpose.msra.mxu0 0.0
    %1466 = vmatprep.subr.mxu0 0.0
    %1467 = vmatpush1.xpose.msra.mxu0 0.0
    %1468 = vmatprep.subr.mxu0 0.0
    %1469 = vmatpush1.xpose.msra.mxu0 0.0
    %1470 = vmatprep.subr.mxu0 0.0
    %1471 = vmatpush1.xpose.msra.mxu0 0.0
    %1472 = vmatprep.subr.mxu0 0.0
    %1473 = vmatpush1.xpose.msra.mxu0 0.0
    %1474 = vmatprep.subr.mxu0 0.0
    %1475 = vmatpush1.xpose.msra.mxu0 0.0
    %1476 = vmatprep.subr.mxu0 0.0
    %1477 = vmatpush1.xpose.msra.mxu0 0.0
    %1478 = vmatprep.subr.mxu0 0.0
    %1479 = vmatpush1.xpose.msra.mxu0 0.0
    %1480 = vmatprep.subr.mxu0 0.0
    %1481 = vmatpush1.xpose.msra.mxu0 0.0
    %1482 = vmatprep.subr.mxu0 0.0
    %1483 = vmatpush1.xpose.msra.mxu0 0.0
    %1484 = vmatprep.subr.mxu0 0.0
    %1485 = vmatpush1.xpose.msra.mxu0 0.0
    %1486 = vmatprep.subr.mxu0 0.0
    %1487 = vmatpush1.xpose.msra.mxu0 0.0
    %1488 = vmatprep.subr.mxu0 0.0
    %1489 = vmatpush1.xpose.msra.mxu0 0.0
    %1490 = vmatprep.subr.mxu0 0.0
    %1491 = vmatpush1.xpose.msra.mxu0 0.0
    %1492 = vmatprep.subr.mxu0 0.0
    %1493 = vmatpush1.xpose.msra.mxu0 0.0
    %1494 = vmatprep.subr.mxu0 0.0
    %1495 = vmatpush1.xpose.msra.mxu0 0.0
    %1496 = vmatprep.subr.mxu0 0.0
    %1497 = vmatpush1.xpose.msra.mxu0 0.0
    %1498 = vmatprep.subr.mxu0 0.0
    %1499 = vmatpush1.xpose.msra.mxu0 0.0
    %1500 = vmatprep.subr.mxu0 0.0
    %1501 = vmatpush1.xpose.msra.mxu0 0.0
    %1502 = vmatprep.subr.mxu0 0.0
    %1503 = vmatpush1.xpose.msra.mxu0 0.0
    %1504 = vmatprep.mubr.f32.mxu0 0.0
    %1505 = vmatmul.mubr.f32.gmra.mrb[0].mxu0 %v1436
    %v1506 = vpop.f32.mrb[0].mxu0
    %v1507 = vadd.f32 0.0, %v1506
    %v1508 = vpop.f32.mrb[0].mxu0
    %1509 = vdwg.mxu0
    %1510 = vrot.lane.b32.xlu0 %v195, 104
    %v1511 = vpop.permute.xlu0 %1510
    %1512 = vrot.lane.b32.xlu0 %v195, 72
    %v1513 = vpop.permute.xlu0 %1512
    %v1514 = vsel %vm201, %v1511, 0
    %v1516 = vsel %vm201, %v1513, 0
    %1518 = vmatprep.subr.mxu0 0.0
    %1519 = vmatpush1.xpose.msra.mxu0 %v1516
    %1520 = vmatprep.subr.mxu0 0.0
    %1521 = vmatpush1.xpose.msra.mxu0 0.0
    %1522 = vmatprep.subr.mxu0 0.0
    %1523 = vmatpush1.xpose.msra.mxu0 0.0
    %1524 = vmatprep.subr.mxu0 0.0
    %1525 = vmatpush1.xpose.msra.mxu0 0.0
    %1526 = vmatprep.subr.mxu0 0.0
    %1527 = vmatpush1.xpose.msra.mxu0 0.0
    %1528 = vmatprep.subr.mxu0 0.0
    %1529 = vmatpush1.xpose.msra.mxu0 0.0
    %1530 = vmatprep.subr.mxu0 0.0
    %1531 = vmatpush1.xpose.msra.mxu0 0.0
    %1532 = vmatprep.subr.mxu0 0.0
    %1533 = vmatpush1.xpose.msra.mxu0 0.0
    %1534 = vmatprep.subr.mxu0 0.0
    %1535 = vmatpush1.xpose.msra.mxu0 0.0
    %1536 = vmatprep.subr.mxu0 0.0
    %1537 = vmatpush1.xpose.msra.mxu0 0.0
    %1538 = vmatprep.subr.mxu0 0.0
    %1539 = vmatpush1.xpose.msra.mxu0 0.0
    %1540 = vmatprep.subr.mxu0 0.0
    %1541 = vmatpush1.xpose.msra.mxu0 0.0
    %1542 = vmatprep.subr.mxu0 0.0
    %1543 = vmatpush1.xpose.msra.mxu0 0.0
    %1544 = vmatprep.subr.mxu0 0.0
    %1545 = vmatpush1.xpose.msra.mxu0 0.0
    %1546 = vmatprep.subr.mxu0 0.0
    %1547 = vmatpush1.xpose.msra.mxu0 0.0
    %1548 = vmatprep.subr.mxu0 0.0
    %1549 = vmatpush1.xpose.msra.mxu0 0.0
    %1550 = vmatprep.subr.mxu0 0.0
    %1551 = vmatpush1.xpose.msra.mxu0 0.0
    %1552 = vmatprep.subr.mxu0 0.0
    %1553 = vmatpush1.xpose.msra.mxu0 0.0
    %1554 = vmatprep.subr.mxu0 0.0
    %1555 = vmatpush1.xpose.msra.mxu0 0.0
    %1556 = vmatprep.subr.mxu0 0.0
    %1557 = vmatpush1.xpose.msra.mxu0 0.0
    %1558 = vmatprep.subr.mxu0 0.0
    %1559 = vmatpush1.xpose.msra.mxu0 0.0
    %1560 = vmatprep.subr.mxu0 0.0
    %1561 = vmatpush1.xpose.msra.mxu0 0.0
    %1562 = vmatprep.subr.mxu0 0.0
    %1563 = vmatpush1.xpose.msra.mxu0 0.0
    %1564 = vmatprep.subr.mxu0 0.0
    %1565 = vmatpush1.xpose.msra.mxu0 0.0
    %1566 = vmatprep.subr.mxu0 0.0
    %1567 = vmatpush1.xpose.msra.mxu0 0.0
    %1568 = vmatprep.subr.mxu0 0.0
    %1569 = vmatpush1.xpose.msra.mxu0 0.0
    %1570 = vmatprep.subr.mxu0 0.0
    %1571 = vmatpush1.xpose.msra.mxu0 0.0
    %1572 = vmatprep.subr.mxu0 0.0
    %1573 = vmatpush1.xpose.msra.mxu0 0.0
    %1574 = vmatprep.subr.mxu0 0.0
    %1575 = vmatpush1.xpose.msra.mxu0 0.0
    %1576 = vmatprep.subr.mxu0 0.0
    %1577 = vmatpush1.xpose.msra.mxu0 0.0
    %1578 = vmatprep.subr.mxu0 0.0
    %1579 = vmatpush1.xpose.msra.mxu0 0.0
    %1580 = vmatprep.subr.mxu0 0.0
    %1581 = vmatpush1.xpose.msra.mxu0 0.0
    %1582 = vmatprep.mubr.f32.mxu0 0.0
    %1583 = vmatmul.mubr.f32.gmra.mrb[0].mxu0 %v1514
    %v1584 = vpop.f32.mrb[0].mxu0
    %v1585 = vadd.f32 0.0, %v1584
    %v1586 = vpop.f32.mrb[0].mxu0
    %1587 = vdwg.mxu0
    %v1588 = vsel %vm201, %v1507, -inf
    %1589 = vmax.xlane.f32.xlu0 %v1588
    %v1590 = vpop.xlane.xlu0 %1589
    %v1591 = vsel %vm201, %v1585, -inf
    %1592 = vmax.xlane.f32.xlu0 %v1591
    %v1593 = vpop.xlane.xlu0 %1592
    %v1594 = vsub.f32 %v1507, %v1590
    %v1595 = vsub.f32 %v1585, %v1593
    %v1596 = vmul.f32 %v1594, 1.442695
    %v1597 = vpow.pop %v1596
    %v1598 = vmul.f32 %v1595, 1.442695
    %v1599 = vpow.pop %v1598
    %v1600 = vsel %vm201, %v1597, 0.0
    %1601 = vadd.xlane.f32.xlu0 %v1600
    %v1602 = vpop.xlane.xlu0 %1601
    %v1603 = vsel %vm201, %v1599, 0.0
    %1604 = vadd.xlane.f32.xlu0 %v1603
    %v1605 = vpop.xlane.xlu0 %1604
    %v1606 = vrcp.pop %v1602
    %v1607 = vrcp.pop %v1605
    %v1608 = vmul.f32 %v1597, %v1606
    %v1609 = vmul.f32 %v1599, %v1607
    %1610 = vrot.lane.b32.xlu0 %v190, 40
    %v1611 = vpop.permute.xlu0 %1610
    %v1614 = vsel %vm201, %v1608, 0
    %1616 = vmatprep.subr.mxu0 0.0
    %1617 = vmatpush1.msra.mxu0 %v1611
    %1618 = vmatprep.subr.mxu0 0.0
    %1619 = vmatpush1.msra.mxu0 0.0
    %1620 = vmatprep.subr.mxu0 0.0
    %1621 = vmatpush1.msra.mxu0 0.0
    %1622 = vmatprep.subr.mxu0 0.0
    %1623 = vmatpush1.msra.mxu0 0.0
    %1624 = vmatprep.subr.mxu0 0.0
    %1625 = vmatpush1.msra.mxu0 0.0
    %1626 = vmatprep.subr.mxu0 0.0
    %1627 = vmatpush1.msra.mxu0 0.0
    %1628 = vmatprep.subr.mxu0 0.0
    %1629 = vmatpush1.msra.mxu0 0.0
    %1630 = vmatprep.subr.mxu0 0.0
    %1631 = vmatpush1.msra.mxu0 0.0
    %1632 = vmatprep.subr.mxu0 0.0
    %1633 = vmatpush1.msra.mxu0 0.0
    %1634 = vmatprep.subr.mxu0 0.0
    %1635 = vmatpush1.msra.mxu0 0.0
    %1636 = vmatprep.subr.mxu0 0.0
    %1637 = vmatpush1.msra.mxu0 0.0
    %1638 = vmatprep.subr.mxu0 0.0
    %1639 = vmatpush1.msra.mxu0 0.0
    %1640 = vmatprep.subr.mxu0 0.0
    %1641 = vmatpush1.msra.mxu0 0.0
    %1642 = vmatprep.subr.mxu0 0.0
    %1643 = vmatpush1.msra.mxu0 0.0
    %1644 = vmatprep.subr.mxu0 0.0
    %1645 = vmatpush1.msra.mxu0 0.0
    %1646 = vmatprep.subr.mxu0 0.0
    %1647 = vmatpush1.msra.mxu0 0.0
    %1648 = vmatprep.subr.mxu0 0.0
    %1649 = vmatpush1.msra.mxu0 0.0
    %1650 = vmatprep.subr.mxu0 0.0
    %1651 = vmatpush1.msra.mxu0 0.0
    %1652 = vmatprep.subr.mxu0 0.0
    %1653 = vmatpush1.msra.mxu0 0.0
    %1654 = vmatprep.subr.mxu0 0.0
    %1655 = vmatpush1.msra.mxu0 0.0
    %1656 = vmatprep.subr.mxu0 0.0
    %1657 = vmatpush1.msra.mxu0 0.0
    %1658 = vmatprep.subr.mxu0 0.0
    %1659 = vmatpush1.msra.mxu0 0.0
    %1660 = vmatprep.subr.mxu0 0.0
    %1661 = vmatpush1.msra.mxu0 0.0
    %1662 = vmatprep.subr.mxu0 0.0
    %1663 = vmatpush1.msra.mxu0 0.0
    %1664 = vmatprep.subr.mxu0 0.0
    %1665 = vmatpush1.msra.mxu0 0.0
    %1666 = vmatprep.subr.mxu0 0.0
    %1667 = vmatpush1.msra.mxu0 0.0
    %1668 = vmatprep.subr.mxu0 0.0
    %1669 = vmatpush1.msra.mxu0 0.0
    %1670 = vmatprep.subr.mxu0 0.0
    %1671 = vmatpush1.msra.mxu0 0.0
    %1672 = vmatprep.subr.mxu0 0.0
    %1673 = vmatpush1.msra.mxu0 0.0
    %1674 = vmatprep.subr.mxu0 0.0
    %1675 = vmatpush1.msra.mxu0 0.0
    %1676 = vmatprep.subr.mxu0 0.0
    %1677 = vmatpush1.msra.mxu0 0.0
    %1678 = vmatprep.subr.mxu0 0.0
    %1679 = vmatpush1.msra.mxu0 0.0
    %1680 = vmatprep.mubr.f32.mxu0 0.0
    %1681 = vmatmul.mubr.f32.gmra.mrb[0].mxu0 %v1614
    %v1682 = vpop.f32.mrb[0].mxu0
    %v1683 = vadd.f32 0.0, %v1682
    %v1684 = vpop.f32.mrb[0].mxu0
    %1685 = vdwg.mxu0
    %1686 = vrot.lane.b32.xlu0 %v195, 40
    %v1687 = vpop.permute.xlu0 %1686
    %v1690 = vsel %vm201, %v1609, 0
    %1692 = vmatprep.subr.mxu0 0.0
    %1693 = vmatpush1.msra.mxu0 %v1687
    %1694 = vmatprep.subr.mxu0 0.0
    %1695 = vmatpush1.msra.mxu0 0.0
    %1696 = vmatprep.subr.mxu0 0.0
    %1697 = vmatpush1.msra.mxu0 0.0
    %1698 = vmatprep.subr.mxu0 0.0
    %1699 = vmatpush1.msra.mxu0 0.0
    %1700 = vmatprep.subr.mxu0 0.0
    %1701 = vmatpush1.msra.mxu0 0.0
    %1702 = vmatprep.subr.mxu0 0.0
    %1703 = vmatpush1.msra.mxu0 0.0
    %1704 = vmatprep.subr.mxu0 0.0
    %1705 = vmatpush1.msra.mxu0 0.0
    %1706 = vmatprep.subr.mxu0 0.0
    %1707 = vmatpush1.msra.mxu0 0.0
    %1708 = vmatprep.subr.mxu0 0.0
    %1709 = vmatpush1.msra.mxu0 0.0
    %1710 = vmatprep.subr.mxu0 0.0
    %1711 = vmatpush1.msra.mxu0 0.0
    %1712 = vmatprep.subr.mxu0 0.0
    %1713 = vmatpush1.msra.mxu0 0.0
    %1714 = vmatprep.subr.mxu0 0.0
    %1715 = vmatpush1.msra.mxu0 0.0
    %1716 = vmatprep.subr.mxu0 0.0
    %1717 = vmatpush1.msra.mxu0 0.0
    %1718 = vmatprep.subr.mxu0 0.0
    %1719 = vmatpush1.msra.mxu0 0.0
    %1720 = vmatprep.subr.mxu0 0.0
    %1721 = vmatpush1.msra.mxu0 0.0
    %1722 = vmatprep.subr.mxu0 0.0
    %1723 = vmatpush1.msra.mxu0 0.0
    %1724 = vmatprep.subr.mxu0 0.0
    %1725 = vmatpush1.msra.mxu0 0.0
    %1726 = vmatprep.subr.mxu0 0.0
    %1727 = vmatpush1.msra.mxu0 0.0
    %1728 = vmatprep.subr.mxu0 0.0
    %1729 = vmatpush1.msra.mxu0 0.0
    %1730 = vmatprep.subr.mxu0 0.0
    %1731 = vmatpush1.msra.mxu0 0.0
    %1732 = vmatprep.subr.mxu0 0.0
    %1733 = vmatpush1.msra.mxu0 0.0
    %1734 = vmatprep.subr.mxu0 0.0
    %1735 = vmatpush1.msra.mxu0 0.0
    %1736 = vmatprep.subr.mxu0 0.0
    %1737 = vmatpush1.msra.mxu0 0.0
    %1738 = vmatprep.subr.mxu0 0.0
    %1739 = vmatpush1.msra.mxu0 0.0
    %1740 = vmatprep.subr.mxu0 0.0
    %1741 = vmatpush1.msra.mxu0 0.0
    %1742 = vmatprep.subr.mxu0 0.0
    %1743 = vmatpush1.msra.mxu0 0.0
    %1744 = vmatprep.subr.mxu0 0.0
    %1745 = vmatpush1.msra.mxu0 0.0
    %1746 = vmatprep.subr.mxu0 0.0
    %1747 = vmatpush1.msra.mxu0 0.0
    %1748 = vmatprep.subr.mxu0 0.0
    %1749 = vmatpush1.msra.mxu0 0.0
    %1750 = vmatprep.subr.mxu0 0.0
    %1751 = vmatpush1.msra.mxu0 0.0
    %1752 = vmatprep.subr.mxu0 0.0
    %1753 = vmatpush1.msra.mxu0 0.0
    %1754 = vmatprep.subr.mxu0 0.0
    %1755 = vmatpush1.msra.mxu0 0.0
    %1756 = vmatprep.mubr.f32.mxu0 0.0
    %1757 = vmatmul.mubr.f32.gmra.mrb[0].mxu0 %v1690
    %v1758 = vpop.f32.mrb[0].mxu0
    %v1759 = vadd.f32 0.0, %v1758
    %v1760 = vpop.f32.mrb[0].mxu0
    %1761 = vdwg.mxu0
    %v1763 = vsel %vm201, %v1683, 0
    %v1766 = vsel %vm201, %v1759, 0
    %1768 = vmatprep.subr.mxu0 0.0
    %1769 = vmatpush1.msra.mxu0 %v60
    %1770 = vmatprep.subr.mxu0 0.0
    %1771 = vmatpush1.msra.mxu0 0.0
    %1772 = vmatprep.subr.mxu0 0.0
    %1773 = vmatpush1.msra.mxu0 0.0
    %1774 = vmatprep.subr.mxu0 0.0
    %1775 = vmatpush1.msra.mxu0 0.0
    %1776 = vmatprep.subr.mxu0 0.0
    %1777 = vmatpush1.msra.mxu0 0.0
    %1778 = vmatprep.subr.mxu0 0.0
    %1779 = vmatpush1.msra.mxu0 0.0
    %1780 = vmatprep.subr.mxu0 0.0
    %1781 = vmatpush1.msra.mxu0 0.0
    %1782 = vmatprep.subr.mxu0 0.0
    %1783 = vmatpush1.msra.mxu0 0.0
    %1784 = vmatprep.subr.mxu0 0.0
    %1785 = vmatpush1.msra.mxu0 0.0
    %1786 = vmatprep.subr.mxu0 0.0
    %1787 = vmatpush1.msra.mxu0 0.0
    %1788 = vmatprep.subr.mxu0 0.0
    %1789 = vmatpush1.msra.mxu0 0.0
    %1790 = vmatprep.subr.mxu0 0.0
    %1791 = vmatpush1.msra.mxu0 0.0
    %1792 = vmatprep.subr.mxu0 0.0
    %1793 = vmatpush1.msra.mxu0 0.0
    %1794 = vmatprep.subr.mxu0 0.0
    %1795 = vmatpush1.msra.mxu0 0.0
    %1796 = vmatprep.subr.mxu0 0.0
    %1797 = vmatpush1.msra.mxu0 0.0
    %1798 = vmatprep.subr.mxu0 0.0
    %1799 = vmatpush1.msra.mxu0 0.0
    %1800 = vmatprep.subr.mxu0 0.0
    %1801 = vmatpush1.msra.mxu0 0.0
    %1802 = vmatprep.subr.mxu0 0.0
    %1803 = vmatpush1.msra.mxu0 0.0
    %1804 = vmatprep.subr.mxu0 0.0
    %1805 = vmatpush1.msra.mxu0 0.0
    %1806 = vmatprep.subr.mxu0 0.0
    %1807 = vmatpush1.msra.mxu0 0.0
    %1808 = vmatprep.subr.mxu0 0.0
    %1809 = vmatpush1.msra.mxu0 0.0
    %1810 = vmatprep.subr.mxu0 0.0
    %1811 = vmatpush1.msra.mxu0 0.0
    %1812 = vmatprep.subr.mxu0 0.0
    %1813 = vmatpush1.msra.mxu0 0.0
    %1814 = vmatprep.subr.mxu0 0.0
    %1815 = vmatpush1.msra.mxu0 0.0
    %1816 = vmatprep.subr.mxu0 0.0
    %1817 = vmatpush1.msra.mxu0 0.0
    %1818 = vmatprep.subr.mxu0 0.0
    %1819 = vmatpush1.msra.mxu0 0.0
    %1820 = vmatprep.subr.mxu0 0.0
    %1821 = vmatpush1.msra.mxu0 0.0
    %1822 = vmatprep.subr.mxu0 0.0
    %1823 = vmatpush1.msra.mxu0 0.0
    %1824 = vmatprep.subr.mxu0 0.0
    %1825 = vmatpush1.msra.mxu0 0.0
    %1826 = vmatprep.subr.mxu0 0.0
    %1827 = vmatpush1.msra.mxu0 0.0
    %1828 = vmatprep.subr.mxu0 0.0
    %1829 = vmatpush1.msra.mxu0 0.0
    %1830 = vmatprep.subr.mxu0 0.0
    %1831 = vmatpush1.msra.mxu0 0.0
    %1832 = vmatprep.mubr.f32.mxu0 0.0
    %1833 = vmatmul.mubr.f32.gmra.mrb[0].mxu0 %v1763
    %v1834 = vpop.f32.mrb[0].mxu0
    %v1835 = vadd.f32 0.0, %v1834
    %v1836 = vpop.f32.mrb[0].mxu0
    %1837 = vmatprep.mubr.f32.mxu0 0.0
    %1838 = vmatmul.mubr.f32.gmra.mrb[0].mxu0 %v1766
    %v1839 = vpop.f32.mrb[0].mxu0
    %v1840 = vadd.f32 0.0, %v1839
    %v1841 = vpop.f32.mrb[0].mxu0
    %1842 = vdwg.mxu0
    %v1843 = vadd.f32 %v1430, %v1835
    %v1844 = vadd.f32 %v1431, %v1840
    %v1845 = vadd.f32 %v43, %v1843
    %v1846 = vadd.f32 %v44, %v1844
    %v1847 = vlaneseq
    %v1848 = vshrl.u32 %v1847, 7
    %v1849 = vsub.s32 0, %v1848
    %v1850 = vrot.slane %v50, %v1849
    %v1851 = vadd.f32 %v1845, %v1850
    %v1852 = vadd.f32 %v1846, %v1850
    %v1853 = vsel %vm73, %v1851, 0.0
    %1854 = vadd.xlane.f32.xlu0 %v1853
    %v1855 = vpop.xlane.xlu0 %1854
    %v1856 = vsel %vm73, %v1852, 0.0
    %1857 = vadd.xlane.f32.xlu0 %v1856
    %v1858 = vpop.xlane.xlu0 %1857
    %v1859 = vmul.f32 %v1855, %v80
    %v1860 = vmul.f32 %v1858, %v80
    %v1861 = vsub.f32 %v1851, %v1859
    %v1862 = vsub.f32 %v1852, %v1860
    %v1863 = vmul.f32 %v1861, %v1861
    %v1864 = vmul.f32 %v1862, %v1862
    %v1865 = vsel %vm73, %v1863, 0.0
    %1866 = vadd.xlane.f32.xlu0 %v1865
    %v1867 = vpop.xlane.xlu0 %1866
    %v1868 = vsel %vm73, %v1864, 0.0
    %1869 = vadd.xlane.f32.xlu0 %v1868
    %v1870 = vpop.xlane.xlu0 %1869
    %v1871 = vmul.f32 %v1867, %v80
    %v1872 = vmul.f32 %v1870, %v80
    %v1873 = vadd.f32 %v1871, 1e-05
    %v1874 = vadd.f32 %v1872, 1e-05
    %v1875 = vrsqrt.pop %v1873
    %v1876 = vrsqrt.pop %v1874
    %v1877 = vmul.f32 %v1861, %v1875
    %v1878 = vmul.f32 %v1862, %v1876
    %v1879 = vlaneseq
    %v1880 = vshrl.u32 %v1879, 7
    %v1881 = vsub.s32 0, %v1880
    %v1882 = vrot.slane %v47, %v1881
    %v1883 = vmul.f32 %v1877, %v1882
    %v1884 = vmul.f32 %v1878, %v1882
    %v1885 = vlaneseq
    %v1886 = vshrl.u32 %v1885, 7
    %v1887 = vsub.s32 0, %v1886
    %v1888 = vrot.slane %v48, %v1887
    %v1889 = vadd.f32 %v1883, %v1888
    %v1890 = vadd.f32 %v1884, %v1888
    %v1891 = vlaneseq
    %v1892 = vshrl.u32 %v1891, 7
    %v1893 = vsub.s32 0, %v1892
    %v1894 = vrot.slane %v51, %v1893
    %v1896 = vsel %vm73, %v1889, 0
    %v1899 = vsel %vm73, %v1890, 0
    %1901 = vmatprep.subr.mxu0 0.0
    %1902 = vmatpush1.msra.mxu0 %v61
    %1903 = vmatprep.subr.mxu0 0.0
    %1904 = vmatpush1.msra.mxu0 %v62
    %1905 = vmatprep.subr.mxu0 0.0
    %1906 = vmatpush1.msra.mxu0 %v63
    %1907 = vmatprep.subr.mxu0 0.0
    %1908 = vmatpush1.msra.mxu0 %v64
    %1909 = vmatprep.subr.mxu0 0.0
    %1910 = vmatpush1.msra.mxu0 0.0
    %1911 = vmatprep.subr.mxu0 0.0
    %1912 = vmatpush1.msra.mxu0 0.0
    %1913 = vmatprep.subr.mxu0 0.0
    %1914 = vmatpush1.msra.mxu0 0.0
    %1915 = vmatprep.subr.mxu0 0.0
    %1916 = vmatpush1.msra.mxu0 0.0
    %1917 = vmatprep.subr.mxu0 0.0
    %1918 = vmatpush1.msra.mxu0 0.0
    %1919 = vmatprep.subr.mxu0 0.0
    %1920 = vmatpush1.msra.mxu0 0.0
    %1921 = vmatprep.subr.mxu0 0.0
    %1922 = vmatpush1.msra.mxu0 0.0
    %1923 = vmatprep.subr.mxu0 0.0
    %1924 = vmatpush1.msra.mxu0 0.0
    %1925 = vmatprep.subr.mxu0 0.0
    %1926 = vmatpush1.msra.mxu0 0.0
    %1927 = vmatprep.subr.mxu0 0.0
    %1928 = vmatpush1.msra.mxu0 0.0
    %1929 = vmatprep.subr.mxu0 0.0
    %1930 = vmatpush1.msra.mxu0 0.0
    %1931 = vmatprep.subr.mxu0 0.0
    %1932 = vmatpush1.msra.mxu0 0.0
    %1933 = vmatprep.subr.mxu0 0.0
    %1934 = vmatpush1.msra.mxu0 0.0
    %1935 = vmatprep.subr.mxu0 0.0
    %1936 = vmatpush1.msra.mxu0 0.0
    %1937 = vmatprep.subr.mxu0 0.0
    %1938 = vmatpush1.msra.mxu0 0.0
    %1939 = vmatprep.subr.mxu0 0.0
    %1940 = vmatpush1.msra.mxu0 0.0
    %1941 = vmatprep.subr.mxu0 0.0
    %1942 = vmatpush1.msra.mxu0 0.0
    %1943 = vmatprep.subr.mxu0 0.0
    %1944 = vmatpush1.msra.mxu0 0.0
    %1945 = vmatprep.subr.mxu0 0.0
    %1946 = vmatpush1.msra.mxu0 0.0
    %1947 = vmatprep.subr.mxu0 0.0
    %1948 = vmatpush1.msra.mxu0 0.0
    %1949 = vmatprep.subr.mxu0 0.0
    %1950 = vmatpush1.msra.mxu0 0.0
    %1951 = vmatprep.subr.mxu0 0.0
    %1952 = vmatpush1.msra.mxu0 0.0
    %1953 = vmatprep.subr.mxu0 0.0
    %1954 = vmatpush1.msra.mxu0 0.0
    %1955 = vmatprep.subr.mxu0 0.0
    %1956 = vmatpush1.msra.mxu0 0.0
    %1957 = vmatprep.subr.mxu0 0.0
    %1958 = vmatpush1.msra.mxu0 0.0
    %1959 = vmatprep.subr.mxu0 0.0
    %1960 = vmatpush1.msra.mxu0 0.0
    %1961 = vmatprep.subr.mxu0 0.0
    %1962 = vmatpush1.msra.mxu0 0.0
    %1963 = vmatprep.subr.mxu0 0.0
    %1964 = vmatpush1.msra.mxu0 0.0
    %1965 = vmatprep.mubr.f32.mxu0 0.0
    %1966 = vmatmul.mubr.f32.gmra.mrb[0].mxu0 %v1896
    %v1967 = vpop.f32.mrb[0].mxu0
    %v1968 = vadd.f32 %v1894, %v1967
    %v1969 = vpop.f32.mrb[0].mxu0
    %1970 = vmatprep.mubr.f32.mxu0 0.0
    %1971 = vmatmul.mubr.f32.gmra.mrb[0].mxu0 %v1899
    %v1972 = vpop.f32.mrb[0].mxu0
    %v1973 = vadd.f32 %v1894, %v1972
    %v1974 = vpop.f32.mrb[0].mxu0
    %1975 = vdwg.mxu0
    %v1976 = vmul.f32 %v1968, %v1968
    %v1977 = vmul.f32 %v1973, %v1973
    %v1978 = vmul.f32 %v1968, %v1976
    %v1979 = vmul.f32 %v1973, %v1977
    %v1980 = vmul.f32 %v1978, 0.044715
    %v1981 = vmul.f32 %v1979, 0.044715
    %v1982 = vadd.f32 %v1968, %v1980
    %v1983 = vadd.f32 %v1973, %v1981
    %v1984 = vmul.f32 %v1982, 0.7978846
    %v1985 = vmul.f32 %v1983, 0.7978846
    %v1986 = vtanh.pop %v1984
    %v1987 = vtanh.pop %v1985
    %v1988 = vadd.f32 %v1986, 1.0
    %v1989 = vadd.f32 %v1987, 1.0
    %v1990 = vmul.f32 %v1988, 0.5
    %v1991 = vmul.f32 %v1989, 0.5
    %v1992 = vmul.f32 %v1968, %v1990
    %v1993 = vmul.f32 %v1973, %v1991
    %vm1994 = vcmask 523264
    %v1996 = vsel %vm1994, %v1992, 0
    %v1999 = vsel %vm1994, %v1993, 0
    %2001 = vmatprep.subr.mxu0 0.0
    %2002 = vmatpush1.msra.mxu0 %v65
    %2003 = vmatprep.subr.mxu0 0.0
    %2004 = vmatpush1.msra.mxu0 %v66
    %2005 = vmatprep.subr.mxu0 0.0
    %2006 = vmatpush1.msra.mxu0 %v67
    %2007 = vmatprep.subr.mxu0 0.0
    %2008 = vmatpush1.msra.mxu0 %v68
    %2009 = vmatprep.subr.mxu0 0.0
    %2010 = vmatpush1.msra.mxu0 %v69
    %2011 = vmatprep.subr.mxu0 0.0
    %2012 = vmatpush1.msra.mxu0 %v70
    %2013 = vmatprep.subr.mxu0 0.0
    %2014 = vmatpush1.msra.mxu0 %v71
    %2015 = vmatprep.subr.mxu0 0.0
    %2016 = vmatpush1.msra.mxu0 %v72
    %2017 = vmatprep.subr.mxu0 0.0
    %2018 = vmatpush1.msra.mxu0 0.0
    %2019 = vmatprep.subr.mxu0 0.0
    %2020 = vmatpush1.msra.mxu0 0.0
    %2021 = vmatprep.subr.mxu0 0.0
    %2022 = vmatpush1.msra.mxu0 0.0
    %2023 = vmatprep.subr.mxu0 0.0
    %2024 = vmatpush1.msra.mxu0 0.0
    %2025 = vmatprep.subr.mxu0 0.0
    %2026 = vmatpush1.msra.mxu0 0.0
    %2027 = vmatprep.subr.mxu0 0.0
    %2028 = vmatpush1.msra.mxu0 0.0
    %2029 = vmatprep.subr.mxu0 0.0
    %2030 = vmatpush1.msra.mxu0 0.0
    %2031 = vmatprep.subr.mxu0 0.0
    %2032 = vmatpush1.msra.mxu0 0.0
    %2033 = vmatprep.subr.mxu0 0.0
    %2034 = vmatpush1.msra.mxu0 0.0
    %2035 = vmatprep.subr.mxu0 0.0
    %2036 = vmatpush1.msra.mxu0 0.0
    %2037 = vmatprep.subr.mxu0 0.0
    %2038 = vmatpush1.msra.mxu0 0.0
    %2039 = vmatprep.subr.mxu0 0.0
    %2040 = vmatpush1.msra.mxu0 0.0
    %2041 = vmatprep.subr.mxu0 0.0
    %2042 = vmatpush1.msra.mxu0 0.0
    %2043 = vmatprep.subr.mxu0 0.0
    %2044 = vmatpush1.msra.mxu0 0.0
    %2045 = vmatprep.subr.mxu0 0.0
    %2046 = vmatpush1.msra.mxu0 0.0
    %2047 = vmatprep.subr.mxu0 0.0
    %2048 = vmatpush1.msra.mxu0 0.0
    %2049 = vmatprep.subr.mxu0 0.0
    %2050 = vmatpush1.msra.mxu0 0.0
    %2051 = vmatprep.subr.mxu0 0.0
    %2052 = vmatpush1.msra.mxu0 0.0
    %2053 = vmatprep.subr.mxu0 0.0
    %2054 = vmatpush1.msra.mxu0 0.0
    %2055 = vmatprep.subr.mxu0 0.0
    %2056 = vmatpush1.msra.mxu0 0.0
    %2057 = vmatprep.subr.mxu0 0.0
    %2058 = vmatpush1.msra.mxu0 0.0
    %2059 = vmatprep.subr.mxu0 0.0
    %2060 = vmatpush1.msra.mxu0 0.0
    %2061 = vmatprep.subr.mxu0 0.0
    %2062 = vmatpush1.msra.mxu0 0.0
    %2063 = vmatprep.subr.mxu0 0.0
    %2064 = vmatpush1.msra.mxu0 0.0
    %2065 = vmatprep.mubr.f32.mxu0 0.0
    %2066 = vmatmul.mubr.f32.gmra.mrb[0].mxu0 %v1996
    %v2067 = vpop.f32.mrb[0].mxu0
    %v2068 = vadd.f32 0.0, %v2067
    %v2069 = vpop.f32.mrb[0].mxu0
    %2070 = vmatprep.mubr.f32.mxu0 0.0
    %2071 = vmatmul.mubr.f32.gmra.mrb[0].mxu0 %v1999
    %v2072 = vpop.f32.mrb[0].mxu0
    %v2073 = vadd.f32 0.0, %v2072
    %v2074 = vpop.f32.mrb[0].mxu0
    %2075 = vdwg.mxu0
    %v2076 = vadd.f32 %v1851, %v2068
    %v2077 = vadd.f32 %v1852, %v2073
    %v2078 = vlaneseq
    %v2079 = vshrl.u32 %v2078, 7
    %v2080 = vsub.s32 0, %v2079
    %v2081 = vrot.slane %v52, %v2080
    %v2082 = vadd.f32 %v2076, %v2081
    %v2083 = vadd.f32 %v2077, %v2081
    %2084 = vst.msk [vmem:[#allocation7] sm:$0xff] %vm73, %v2082
    %2085 = vst.msk [vmem:[#allocation7 + $0x8] sm:$0xff] %vm73, %v2083
    // Predicated region
    $region22: #{encoder_block.1} parent=1 // pred_check
      _
    $region23: #{encoder_block.1} parent=1 // pred_check_branch
      %2087 = sbr.rel (0) target = $region25
    $region24: #{encoder_block.1} parent=1 // pred_region
      %s2089 = ssub.s32 256, 256
      %2090 = vsyncadd [#allocation4], %s2089
      %s2091 = sshll.u32 [#allocation7], 4
      %s2092 = int_to_ptr.vmem [resolvable:$true] %s2091
      %2097 = dma.vmem_to_hbm [thread:$0]  %s2092, 256, %s3, [#allocation4], 128, 128, 8
    $region25: #{encoder_block.1} parent=1 // pred_fallthru
      _
    // Predicated region
    $region26: #{encoder_block.1} parent=1 // pred_check
      _
    $region27: #{encoder_block.1} parent=1 // pred_check_branch
      %2099 = sbr.rel (0) target = $region29
    $region28: #{encoder_block.1} parent=1 // pred_region
      %2100 = dma.done [#allocation4], 256
    $region29: #{encoder_block.1} parent=1 // pred_fallthru
      _
    %2101 = vsyncpa [#allocation3], 1
    %2102 = vsyncpa [#allocation6], 1
    %2103 = vsyncpa [#allocation4], 1

</llo_original>
